<compile_context>
chip_gen: v6e
topology: v6e:2x2x1
jax: 0.10.0
libtpu: 0.0.40
codegen_flags: <defaults>
</compile_context>

<pallas_src>
import numpy as np

import jax
import jax.numpy as jnp
from jax import lax
from jax.experimental import pallas as pl
from jax.experimental.pallas import tpu as pltpu


# ----------------------------------------------------------------------------
# Fused kernel: concat -> BN1+ReLU -> 1x1 conv -> (+b2)+ReLU -> 3x3 conv (SAME)
# `block_n` images per grid step; all tensors channel-major (C, H*W).
# ----------------------------------------------------------------------------
def _make_dense_layer_kernel(num_prev, img_w, block_n):
    def kernel(*refs):
        x_refs = refs[:num_prev]
        (s1_ref, b1_ref, w1t_ref, b2_ref, w2_ref, mask_ref) = refs[
            num_prev : num_prev + 6
        ]
        o_ref = refs[num_prev + 6]
        im2col_ref = refs[num_prev + 7]           # VMEM scratch (9*Cmid, HW) bf16

        # load shared operands once per grid step
        s1 = s1_ref[...]                          # (Cin, 1)   f32
        b1 = b1_ref[...]                          # (Cin, 1)   f32
        w1t = w1t_ref[...]                        # (Cmid, Cin) bf16, BN2 scale folded
        b2 = b2_ref[...]                          # (Cmid, 1)  f32
        w2 = w2_ref[...]                          # (G, 9*Cmid) bf16
        masks = mask_ref[...]                     # (9, HW)    f32 0/1

        cmid = w1t.shape[0]
        hw = masks.shape[1]

        for b in range(block_n):                  # static unroll over images
            # --- channel concat of prev_features, in VMEM values --------------
            if num_prev == 1:
                x = x_refs[0][b]                                  # (Cin, HW)
            else:
                x = jnp.concatenate([r[b] for r in x_refs], axis=0)

            # --- BN1 (folded scale/bias) + ReLU --------------------------------
            xn = jnp.maximum(x * s1 + b1, 0.0)                    # (Cin, HW) f32

            # --- 1x1 conv on the MXU (bf16 operands, f32 acc).  BN2's scale is
            #     already folded into w1t, so only the bias + ReLU remain. ------
            y = jnp.dot(w1t, xn.astype(jnp.bfloat16),
                        preferred_element_type=jnp.float32)       # (Cmid, HW)
            yn = jnp.maximum(y + b2, 0.0)                         # (Cmid, HW) f32

            # --- 3x3 SAME conv: build im2col (9*Cmid, HW) in VMEM scratch ------
            #     Each tap is an XLU roll + boundary-mask multiply (the mask
            #     zeros every wrapped lane for a 3x3 / pad=1 stencil).
            for k in range(9):                                    # static unroll
                dy, dx = k // 3 - 1, k % 3 - 1
                off = dy * img_w + dx                             # flat shift
                if off == 0:
                    patch = yn                                    # center tap: all valid
                else:
                    rolled = pltpu.roll(yn, shift=(-off) % hw, axis=1)
                    patch = rolled * masks[k:k + 1, :]
                im2col_ref[k * cmid:(k + 1) * cmid, :] = patch.astype(jnp.bfloat16)

            out = jnp.dot(w2, im2col_ref[...],
                          preferred_element_type=jnp.float32)      # (G, HW)
            o_ref[b] = out.astype(o_ref.dtype)                     # lane-dense store

    return kernel


def _conv3x3_same_masks(H, W):
    """(9, H*W) 0/1 mask: tap k=(ky,kx) valid where source pixel is in-bounds."""
    f = np.arange(H * W)
    ii, jj = f // W, f % W
    masks = []
    for k in range(9):
        dy, dx = k // 3 - 1, k % 3 - 1
        valid = ((ii + dy >= 0) & (ii + dy < H) &
                 (jj + dx >= 0) & (jj + dx < W))
        masks.append(valid)
    return jnp.asarray(np.stack(masks).astype(np.float32))


def _pick_block_batch(n):
    """Images per grid step: amortize per-step overhead, keep >= 2 grid steps."""
    if n <= 2:
        return 1
    for b in range(n // 2, 0, -1):
        if n % b == 0:
            return b
    return 1


def dense_layer_pallas(prev_flat, s1, b1, w1t, b2, w2r, mask, *, img_w):
    """prev_flat: list of (N, c_i, H*W) f32; returns (N, G, H*W) f32."""
    num_prev = len(prev_flat)
    N, _, HW = prev_flat[0].shape
    cin = s1.shape[0]
    cmid = w1t.shape[0]
    G = w2r.shape[0]

    block_n = _pick_block_batch(N)
    assert N % block_n == 0

    in_specs = [
        pl.BlockSpec((block_n, f.shape[1], HW), lambda n: (n, 0, 0))
        for f in prev_flat
    ] + [
        pl.BlockSpec((cin, 1), lambda n: (0, 0)),        # s1
        pl.BlockSpec((cin, 1), lambda n: (0, 0)),        # b1
        pl.BlockSpec((cmid, cin), lambda n: (0, 0)),     # w1^T (BN2 scale folded, bf16)
        pl.BlockSpec((cmid, 1), lambda n: (0, 0)),       # b2
        pl.BlockSpec((G, 9 * cmid), lambda n: (0, 0)),   # w2 (G, 9*Cmid) bf16
        pl.BlockSpec((9, HW), lambda n: (0, 0)),         # boundary masks
    ]

    flops = 2 * N * HW * (cin * cmid + 9 * cmid * G) + 4 * N * HW * (cin + cmid)
    bytes_accessed = (
        4 * N * cin * HW + 4 * N * G * HW               # activations in/out (f32)
        + 2 * (cin * cmid + 9 * cmid * G)               # bf16 weights
        + 4 * (2 * cin + cmid + 9 * HW))                # biases + masks

    return pl.pallas_call(
        _make_dense_layer_kernel(num_prev, img_w, block_n),
        out_shape=jax.ShapeDtypeStruct((N, G, HW), jnp.float32),
        grid_spec=pltpu.PrefetchScalarGridSpec(
            num_scalar_prefetch=0,
            grid=(N // block_n,),
            in_specs=in_specs,
            out_specs=pl.BlockSpec((block_n, G, HW), lambda n: (n, 0, 0)),
            scratch_shapes=[pltpu.VMEM((9 * cmid, HW), jnp.bfloat16)],
        ),
        compiler_params=pltpu.CompilerParams(
            dimension_semantics=("parallel",)),
        cost_estimate=pl.CostEstimate(
            flops=flops, transcendentals=0, bytes_accessed=bytes_accessed),
    )(*prev_flat, s1, b1, w1t, b2, w2r, mask)


# ----------------------------------------------------------------------------
# _DenseLayer forward (inference), PyTorch NCHW interface
# ----------------------------------------------------------------------------
def dense_layer_forward(prev_features_nchw, params, eps=1e-5):
    N, _, H, W = prev_features_nchw[0].shape
    # channel-major flat views: (N, c_i, H*W) — pure reshape, no transpose
    prev_flat = [f.reshape(f.shape[0], f.shape[1], H * W)
                 for f in prev_features_nchw]

    # fold BN (eval mode) into per-channel scale/bias
    s1 = params["gamma1"] / jnp.sqrt(params["var1"] + eps)
    b1 = params["beta1"] - params["mean1"] * s1
    s2 = params["gamma2"] / jnp.sqrt(params["var2"] + eps)
    b2 = params["beta2"] - params["mean2"] * s2

    cin = params["w1"].shape[0]
    cmid, G = params["w2"].shape[2], params["w2"].shape[3]

    # BN2 scale folded into the 1x1-conv weight (no nonlinearity between conv1
    # and BN2); MXU operands cast to bf16 at the boundary, elementwise stays f32.
    w1t = (s2[:, None] * params["w1"].T).astype(jnp.bfloat16)        # (Cmid, Cin)
    w2r = params["w2"].reshape(9 * cmid, G).T.astype(jnp.bfloat16)   # (G, 9*Cmid)
    mask = _conv3x3_same_masks(H, W)                                 # (9, H*W)

    out = dense_layer_pallas(
        prev_flat,
        s1.reshape(cin, 1), b1.reshape(cin, 1), w1t,
        b2.reshape(cmid, 1), w2r, mask,
        img_w=W,
    )
    # TODO(synk): dropout skipped (drop_rate=0 / eval mode -> identity).
    # TODO(synk): production DenseNet sizes (H=W=56, Cin~1K): add row-strip /
    #             Cin-chunk tiling + explicit vmem_limit_bytes on v7x (64 MiB
    #             VMEM), pad HW to a multiple of 128, emit bf16 outputs, and
    #             accept a single pre-concatenated HBM buffer instead of
    #             num_prev separate inputs late in a dense block.
    return out.reshape(N, G, H, W)                                   # already NCHW


# pure-JAX f32 reference for verification
def dense_layer_reference(prev_features_nchw, params, eps=1e-5):
    x = jnp.concatenate(prev_features_nchw, axis=1)
    x = jnp.transpose(x, (0, 2, 3, 1))
    s1 = params["gamma1"] / jnp.sqrt(params["var1"] + eps)
    b1 = params["beta1"] - params["mean1"] * s1
    s2 = params["gamma2"] / jnp.sqrt(params["var2"] + eps)
    b2 = params["beta2"] - params["mean2"] * s2
    y = jnp.maximum(x * s1 + b1, 0.0)
    y = jnp.einsum("nhwc,cd->nhwd", y, params["w1"],
                   precision=lax.Precision.HIGHEST)
    y = jnp.maximum(y * s2 + b2, 0.0)
    o = lax.conv_general_dilated(
        y, params["w2"], window_strides=(1, 1), padding="SAME",
        dimension_numbers=("NHWC", "HWIO", "NHWC"),
        precision=lax.Precision.HIGHEST)
    return jnp.transpose(o, (0, 3, 1, 2))


if __name__ == "__main__":
    # _DenseLayer(num_input_features=16, growth_rate=8, bn_size=4, drop_rate=0)
    N, H, W = 2, 16, 16
    growth_rate, bn_size = 8, 4
    c_prev = (8, 8)                      # two prev_features -> Cin = 16
    cin = sum(c_prev)
    cmid = bn_size * growth_rate         # 32

    key = jax.random.PRNGKey(0)
    ks = jax.random.split(key, 12)
    prev_features = [
        jax.random.normal(ks[i], (N, c, H, W), jnp.float32)
        for i, c in enumerate(c_prev)
    ]

    params = {
        "gamma1": 1.0 + 0.1 * jax.random.normal(ks[2], (cin,), jnp.float32),
        "beta1": 0.1 * jax.random.normal(ks[3], (cin,), jnp.float32),
        "mean1": 0.1 * jax.random.normal(ks[4], (cin,), jnp.float32),
        "var1": jnp.abs(jax.random.normal(ks[5], (cin,), jnp.float32)) + 0.5,
        # conv1: torch (cmid, cin, 1, 1) stored here as (cin, cmid) = weight[:, :, 0, 0].T
        "w1": 0.1 * jax.random.normal(ks[6], (cin, cmid), jnp.float32),
        "gamma2": 1.0 + 0.1 * jax.random.normal(ks[7], (cmid,), jnp.float32),
        "beta2": 0.1 * jax.random.normal(ks[8], (cmid,), jnp.float32),
        "mean2": 0.1 * jax.random.normal(ks[9], (cmid,), jnp.float32),
        "var2": jnp.abs(jax.random.normal(ks[10], (cmid,), jnp.float32)) + 0.5,
        # conv2: torch (growth, cmid, 3, 3) stored here as HWIO (3, 3, cmid, growth)
        "w2": 0.1 * jax.random.normal(ks[11], (3, 3, cmid, growth_rate), jnp.float32),
    }

    out = dense_layer_forward(prev_features, params)
    out = jax.block_until_ready(out)

    ref = dense_layer_reference(prev_features, params)
    assert out.shape == (N, growth_rate, H, W), out.shape
    # bf16 MXU operands (f32 accumulation) -> loosened tolerance vs f32 reference
    assert jnp.allclose(out, ref, atol=7.5e-2, rtol=5e-2), float(
        jnp.max(jnp.abs(out - ref)))

    print("KERNEL_OK")
</pallas_src>

<mosaic_0001>
module attributes {stable_mosaic.version = 11 : i64} {
  func.func @kernel(%arg0: i32, %arg1: memref<1x8x256xf32, #tpu.memory_space<vmem>>, %arg2: memref<1x8x256xf32, #tpu.memory_space<vmem>>, %arg3: memref<16x1xf32, #tpu.memory_space<vmem>>, %arg4: memref<16x1xf32, #tpu.memory_space<vmem>>, %arg5: memref<32x16xbf16, #tpu.memory_space<vmem>>, %arg6: memref<32x1xf32, #tpu.memory_space<vmem>>, %arg7: memref<8x288xbf16, #tpu.memory_space<vmem>>, %arg8: memref<9x256xf32, #tpu.memory_space<vmem>>, %arg9: memref<1x8x256xf32, #tpu.memory_space<vmem>>, %arg10: memref<288x256xbf16, #tpu.memory_space<vmem>>) attributes {dimension_semantics = [#tpu.dimension_semantics<parallel>], iteration_bounds = array<i64: 2>, scalar_prefetch = 0 : i64, scratch_operands = 1 : i64, tpu.core_type = #tpu.core_type<tc>, window_params = [{transform_indices = @transform_0, window_bounds = array<i64: 1, 8, 256>}, {transform_indices = @transform_1, window_bounds = array<i64: 1, 8, 256>}, {pipeline_mode = #tpu.pipeline_mode<synchronous>, transform_indices = @transform_2, window_bounds = array<i64: 16, 1>}, {pipeline_mode = #tpu.pipeline_mode<synchronous>, transform_indices = @transform_3, window_bounds = array<i64: 16, 1>}, {pipeline_mode = #tpu.pipeline_mode<synchronous>, transform_indices = @transform_4, window_bounds = array<i64: 32, 16>}, {pipeline_mode = #tpu.pipeline_mode<synchronous>, transform_indices = @transform_5, window_bounds = array<i64: 32, 1>}, {pipeline_mode = #tpu.pipeline_mode<synchronous>, transform_indices = @transform_6, window_bounds = array<i64: 8, 288>}, {pipeline_mode = #tpu.pipeline_mode<synchronous>, transform_indices = @transform_7, window_bounds = array<i64: 9, 256>}, {transform_indices = @transform_8, window_bounds = array<i64: 1, 8, 256>}]} {
    %c0 = arith.constant 0 : index
    %c0_0 = arith.constant 0 : index
    %0 = vector.load %arg3[%c0, %c0_0] : memref<16x1xf32, #tpu.memory_space<vmem>>, vector<16x1xf32>
    %c0_1 = arith.constant 0 : index
    %c0_2 = arith.constant 0 : index
    %1 = vector.load %arg4[%c0_1, %c0_2] : memref<16x1xf32, #tpu.memory_space<vmem>>, vector<16x1xf32>
    %c0_3 = arith.constant 0 : index
    %c0_4 = arith.constant 0 : index
    %2 = vector.load %arg5[%c0_3, %c0_4] : memref<32x16xbf16, #tpu.memory_space<vmem>>, vector<32x16xbf16>
    %c0_5 = arith.constant 0 : index
    %c0_6 = arith.constant 0 : index
    %3 = vector.load %arg6[%c0_5, %c0_6] : memref<32x1xf32, #tpu.memory_space<vmem>>, vector<32x1xf32>
    %c0_7 = arith.constant 0 : index
    %c0_8 = arith.constant 0 : index
    %4 = vector.load %arg7[%c0_7, %c0_8] : memref<8x288xbf16, #tpu.memory_space<vmem>>, vector<8x288xbf16>
    %c0_9 = arith.constant 0 : index
    %c0_10 = arith.constant 0 : index
    %5 = vector.load %arg8[%c0_9, %c0_10] : memref<9x256xf32, #tpu.memory_space<vmem>>, vector<9x256xf32>
    %c0_11 = arith.constant 0 : index
    %c0_12 = arith.constant 0 : index
    %c0_13 = arith.constant 0 : index
    %6 = vector.load %arg1[%c0_11, %c0_12, %c0_13] : memref<1x8x256xf32, #tpu.memory_space<vmem>>, vector<1x8x256xf32>
    %7 = vector.shape_cast %6 : vector<1x8x256xf32> to vector<8x256xf32>
    %c0_14 = arith.constant 0 : index
    %c0_15 = arith.constant 0 : index
    %c0_16 = arith.constant 0 : index
    %8 = vector.load %arg2[%c0_14, %c0_15, %c0_16] : memref<1x8x256xf32, #tpu.memory_space<vmem>>, vector<1x8x256xf32>
    %9 = vector.shape_cast %8 : vector<1x8x256xf32> to vector<8x256xf32>
    %10 = tpu.concatenate %7, %9 in 0 : vector<8x256xf32>, vector<8x256xf32> -> vector<16x256xf32>
    %11 = vector.broadcast %0 : vector<16x1xf32> to vector<16x256xf32>
    %12 = arith.mulf %10, %11 : vector<16x256xf32>
    %13 = vector.broadcast %1 : vector<16x1xf32> to vector<16x256xf32>
    %14 = arith.addf %12, %13 : vector<16x256xf32>
    %cst = arith.constant 0.000000e+00 : f32
    %15 = vector.broadcast %cst : f32 to vector<16x256xf32>
    %16 = arith.maximumf %14, %15 : vector<16x256xf32>
    %17 = arith.truncf %16 : vector<16x256xf32> to vector<16x256xbf16>
    %cst_17 = arith.constant dense<0.000000e+00> : vector<32x256xf32>
    %18 = tpu.matmul %2, %17, %cst_17 {dimension_numbers = #tpu.dot_dimension_numbers<[1], [0], [0], [1], [0, 0, 1, 1], [], []>} : vector<32x16xbf16>, vector<16x256xbf16>, vector<32x256xf32> -> vector<32x256xf32>
    %19 = vector.broadcast %3 : vector<32x1xf32> to vector<32x256xf32>
    %20 = arith.addf %18, %19 : vector<32x256xf32>
    %cst_18 = arith.constant 0.000000e+00 : f32
    %21 = vector.broadcast %cst_18 : f32 to vector<32x256xf32>
    %22 = arith.maximumf %20, %21 : vector<32x256xf32>
    %c17_i32 = arith.constant 17 : i32
    %23 = tpu.dynamic_rotate %22 by %c17_i32 dim 1 : vector<32x256xf32>, i32 -> vector<32x256xf32>
    %24 = vector.extract_strided_slice %5 {offsets = [0, 0], sizes = [1, 256], strides = [1, 1]} : vector<9x256xf32> to vector<1x256xf32>
    %25 = vector.broadcast %24 : vector<1x256xf32> to vector<32x256xf32>
    %26 = arith.mulf %23, %25 : vector<32x256xf32>
    %27 = arith.truncf %26 : vector<32x256xf32> to vector<32x256xbf16>
    %c0_19 = arith.constant 0 : index
    %c0_20 = arith.constant 0 : index
    %28 = vector.load %arg10[%c0_19, %c0_20] : memref<288x256xbf16, #tpu.memory_space<vmem>>, vector<32x256xbf16>
    tpu.vector_store %arg10[%c0_19, %c0_20], %27 {strides = array<i32>} : memref<288x256xbf16, #tpu.memory_space<vmem>>, vector<32x256xbf16>,
    %c16_i32 = arith.constant 16 : i32
    %29 = tpu.dynamic_rotate %22 by %c16_i32 dim 1 : vector<32x256xf32>, i32 -> vector<32x256xf32>
    %30 = vector.extract_strided_slice %5 {offsets = [1, 0], sizes = [1, 256], strides = [1, 1]} : vector<9x256xf32> to vector<1x256xf32>
    %31 = vector.broadcast %30 : vector<1x256xf32> to vector<32x256xf32>
    %32 = arith.mulf %29, %31 : vector<32x256xf32>
    %33 = arith.truncf %32 : vector<32x256xf32> to vector<32x256xbf16>
    %c32 = arith.constant 32 : index
    %c0_21 = arith.constant 0 : index
    %34 = vector.load %arg10[%c32, %c0_21] : memref<288x256xbf16, #tpu.memory_space<vmem>>, vector<32x256xbf16>
    tpu.vector_store %arg10[%c32, %c0_21], %33 {strides = array<i32>} : memref<288x256xbf16, #tpu.memory_space<vmem>>, vector<32x256xbf16>,
    %c15_i32 = arith.constant 15 : i32
    %35 = tpu.dynamic_rotate %22 by %c15_i32 dim 1 : vector<32x256xf32>, i32 -> vector<32x256xf32>
    %36 = vector.extract_strided_slice %5 {offsets = [2, 0], sizes = [1, 256], strides = [1, 1]} : vector<9x256xf32> to vector<1x256xf32>
    %37 = vector.broadcast %36 : vector<1x256xf32> to vector<32x256xf32>
    %38 = arith.mulf %35, %37 : vector<32x256xf32>
    %39 = arith.truncf %38 : vector<32x256xf32> to vector<32x256xbf16>
    %c64 = arith.constant 64 : index
    %c0_22 = arith.constant 0 : index
    %40 = vector.load %arg10[%c64, %c0_22] : memref<288x256xbf16, #tpu.memory_space<vmem>>, vector<32x256xbf16>
    tpu.vector_store %arg10[%c64, %c0_22], %39 {strides = array<i32>} : memref<288x256xbf16, #tpu.memory_space<vmem>>, vector<32x256xbf16>,
    %c1_i32 = arith.constant 1 : i32
    %41 = tpu.dynamic_rotate %22 by %c1_i32 dim 1 : vector<32x256xf32>, i32 -> vector<32x256xf32>
    %42 = vector.extract_strided_slice %5 {offsets = [3, 0], sizes = [1, 256], strides = [1, 1]} : vector<9x256xf32> to vector<1x256xf32>
    %43 = vector.broadcast %42 : vector<1x256xf32> to vector<32x256xf32>
    %44 = arith.mulf %41, %43 : vector<32x256xf32>
    %45 = arith.truncf %44 : vector<32x256xf32> to vector<32x256xbf16>
    %c96 = arith.constant 96 : index
    %c0_23 = arith.constant 0 : index
    %46 = vector.load %arg10[%c96, %c0_23] : memref<288x256xbf16, #tpu.memory_space<vmem>>, vector<32x256xbf16>
    tpu.vector_store %arg10[%c96, %c0_23], %45 {strides = array<i32>} : memref<288x256xbf16, #tpu.memory_space<vmem>>, vector<32x256xbf16>,
    %47 = arith.truncf %22 : vector<32x256xf32> to vector<32x256xbf16>
    %c128 = arith.constant 128 : index
    %c0_24 = arith.constant 0 : index
    %48 = vector.load %arg10[%c128, %c0_24] : memref<288x256xbf16, #tpu.memory_space<vmem>>, vector<32x256xbf16>
    tpu.vector_store %arg10[%c128, %c0_24], %47 {strides = array<i32>} : memref<288x256xbf16, #tpu.memory_space<vmem>>, vector<32x256xbf16>,
    %c255_i32 = arith.constant 255 : i32
    %49 = tpu.dynamic_rotate %22 by %c255_i32 dim 1 : vector<32x256xf32>, i32 -> vector<32x256xf32>
    %50 = vector.extract_strided_slice %5 {offsets = [5, 0], sizes = [1, 256], strides = [1, 1]} : vector<9x256xf32> to vector<1x256xf32>
    %51 = vector.broadcast %50 : vector<1x256xf32> to vector<32x256xf32>
    %52 = arith.mulf %49, %51 : vector<32x256xf32>
    %53 = arith.truncf %52 : vector<32x256xf32> to vector<32x256xbf16>
    %c160 = arith.constant 160 : index
    %c0_25 = arith.constant 0 : index
    %54 = vector.load %arg10[%c160, %c0_25] : memref<288x256xbf16, #tpu.memory_space<vmem>>, vector<32x256xbf16>
    tpu.vector_store %arg10[%c160, %c0_25], %53 {strides = array<i32>} : memref<288x256xbf16, #tpu.memory_space<vmem>>, vector<32x256xbf16>,
    %c241_i32 = arith.constant 241 : i32
    %55 = tpu.dynamic_rotate %22 by %c241_i32 dim 1 : vector<32x256xf32>, i32 -> vector<32x256xf32>
    %56 = vector.extract_strided_slice %5 {offsets = [6, 0], sizes = [1, 256], strides = [1, 1]} : vector<9x256xf32> to vector<1x256xf32>
    %57 = vector.broadcast %56 : vector<1x256xf32> to vector<32x256xf32>
    %58 = arith.mulf %55, %57 : vector<32x256xf32>
    %59 = arith.truncf %58 : vector<32x256xf32> to vector<32x256xbf16>
    %c192 = arith.constant 192 : index
    %c0_26 = arith.constant 0 : index
    %60 = vector.load %arg10[%c192, %c0_26] : memref<288x256xbf16, #tpu.memory_space<vmem>>, vector<32x256xbf16>
    tpu.vector_store %arg10[%c192, %c0_26], %59 {strides = array<i32>} : memref<288x256xbf16, #tpu.memory_space<vmem>>, vector<32x256xbf16>,
    %c240_i32 = arith.constant 240 : i32
    %61 = tpu.dynamic_rotate %22 by %c240_i32 dim 1 : vector<32x256xf32>, i32 -> vector<32x256xf32>
    %62 = vector.extract_strided_slice %5 {offsets = [7, 0], sizes = [1, 256], strides = [1, 1]} : vector<9x256xf32> to vector<1x256xf32>
    %63 = vector.broadcast %62 : vector<1x256xf32> to vector<32x256xf32>
    %64 = arith.mulf %61, %63 : vector<32x256xf32>
    %65 = arith.truncf %64 : vector<32x256xf32> to vector<32x256xbf16>
    %c224 = arith.constant 224 : index
    %c0_27 = arith.constant 0 : index
    %66 = vector.load %arg10[%c224, %c0_27] : memref<288x256xbf16, #tpu.memory_space<vmem>>, vector<32x256xbf16>
    tpu.vector_store %arg10[%c224, %c0_27], %65 {strides = array<i32>} : memref<288x256xbf16, #tpu.memory_space<vmem>>, vector<32x256xbf16>,
    %c239_i32 = arith.constant 239 : i32
    %67 = tpu.dynamic_rotate %22 by %c239_i32 dim 1 : vector<32x256xf32>, i32 -> vector<32x256xf32>
    %68 = vector.extract_strided_slice %5 {offsets = [8, 0], sizes = [1, 256], strides = [1, 1]} : vector<9x256xf32> to vector<1x256xf32>
    %69 = vector.broadcast %68 : vector<1x256xf32> to vector<32x256xf32>
    %70 = arith.mulf %67, %69 : vector<32x256xf32>
    %71 = arith.truncf %70 : vector<32x256xf32> to vector<32x256xbf16>
    %c256 = arith.constant 256 : index
    %c0_28 = arith.constant 0 : index
    %72 = vector.load %arg10[%c256, %c0_28] : memref<288x256xbf16, #tpu.memory_space<vmem>>, vector<32x256xbf16>
    tpu.vector_store %arg10[%c256, %c0_28], %71 {strides = array<i32>} : memref<288x256xbf16, #tpu.memory_space<vmem>>, vector<32x256xbf16>,
    %c0_29 = arith.constant 0 : index
    %c0_30 = arith.constant 0 : index
    %73 = vector.load %arg10[%c0_29, %c0_30] : memref<288x256xbf16, #tpu.memory_space<vmem>>, vector<288x256xbf16>
    %cst_31 = arith.constant dense<0.000000e+00> : vector<8x256xf32>
    %74 = tpu.matmul %4, %73, %cst_31 {dimension_numbers = #tpu.dot_dimension_numbers<[1], [0], [0], [1], [0, 0, 1, 1], [], []>} : vector<8x288xbf16>, vector<288x256xbf16>, vector<8x256xf32> -> vector<8x256xf32>
    %c0_32 = arith.constant 0 : index
    %c0_33 = arith.constant 0 : index
    %c0_34 = arith.constant 0 : index
    %75 = vector.load %arg9[%c0_32, %c0_33, %c0_34] : memref<1x8x256xf32, #tpu.memory_space<vmem>>, vector<1x8x256xf32>
    %76 = vector.shape_cast %75 : vector<1x8x256xf32> to vector<8x256xf32>
    %77 = vector.shape_cast %74 : vector<8x256xf32> to vector<1x8x256xf32>
    tpu.vector_store %arg9[%c0_32, %c0_33, %c0_34], %77 {strides = array<i32>} : memref<1x8x256xf32, #tpu.memory_space<vmem>>, vector<1x8x256xf32>,
    return
  }
  func.func @transform_0(%arg0: i32) -> (i32, i32, i32) {
    %c0_i32 = arith.constant 0 : i32
    %c0_i32_0 = arith.constant 0 : i32
    %c0_i32_1 = arith.constant 0 : i32
    return %arg0, %c0_i32, %c0_i32_0 : i32, i32, i32
  }
  func.func @transform_1(%arg0: i32) -> (i32, i32, i32) {
    %c0_i32 = arith.constant 0 : i32
    %c0_i32_0 = arith.constant 0 : i32
    %c0_i32_1 = arith.constant 0 : i32
    return %arg0, %c0_i32, %c0_i32_0 : i32, i32, i32
  }
  func.func @transform_2(%arg0: i32) -> (i32, i32) {
    %c0_i32 = arith.constant 0 : i32
    %c0_i32_0 = arith.constant 0 : i32
    %c0_i32_1 = arith.constant 0 : i32
    return %c0_i32, %c0_i32_0 : i32, i32
  }
  func.func @transform_3(%arg0: i32) -> (i32, i32) {
    %c0_i32 = arith.constant 0 : i32
    %c0_i32_0 = arith.constant 0 : i32
    %c0_i32_1 = arith.constant 0 : i32
    return %c0_i32, %c0_i32_0 : i32, i32
  }
  func.func @transform_4(%arg0: i32) -> (i32, i32) {
    %c0_i32 = arith.constant 0 : i32
    %c0_i32_0 = arith.constant 0 : i32
    %c0_i32_1 = arith.constant 0 : i32
    return %c0_i32, %c0_i32_0 : i32, i32
  }
  func.func @transform_5(%arg0: i32) -> (i32, i32) {
    %c0_i32 = arith.constant 0 : i32
    %c0_i32_0 = arith.constant 0 : i32
    %c0_i32_1 = arith.constant 0 : i32
    return %c0_i32, %c0_i32_0 : i32, i32
  }
  func.func @transform_6(%arg0: i32) -> (i32, i32) {
    %c0_i32 = arith.constant 0 : i32
    %c0_i32_0 = arith.constant 0 : i32
    %c0_i32_1 = arith.constant 0 : i32
    return %c0_i32, %c0_i32_0 : i32, i32
  }
  func.func @transform_7(%arg0: i32) -> (i32, i32) {
    %c0_i32 = arith.constant 0 : i32
    %c0_i32_0 = arith.constant 0 : i32
    %c0_i32_1 = arith.constant 0 : i32
    return %c0_i32, %c0_i32_0 : i32, i32
  }
  func.func @transform_8(%arg0: i32) -> (i32, i32, i32) {
    %c0_i32 = arith.constant 0 : i32
    %c0_i32_0 = arith.constant 0 : i32
    %c0_i32_1 = arith.constant 0 : i32
    return %arg0, %c0_i32, %c0_i32_0 : i32, i32, i32
  }
}

</mosaic_0001>

<llo_original>
// kernel: tpu_custom_call.1
$region0: #{tpu_custom_call.1}
  #allocation0 [shape = 'u32[]', space=smem, size = 0x4, offset = 0x4, fixed_abs, tag = 'smem constant byte address 0x4 - core index']
  #allocation1 [shape = 'u32[144,128]{1,0:T(1,128)}', space=vmem, size = 0x12000, scoped, tag = 'internal scratch']
  #allocation2 [shape = 'bf16[288,256]{1,0:T(8,128)(2,1)}', space=vmem, size = 0x24000, scoped, tag = 'scratch operand']
  %s0 = inlined_call_operand.vmem [shape: f32[2,8,256], index: 0, kind: input, shape index: {}]
  %s1 = inlined_call_operand.vmem [shape: f32[2,8,256], index: 1, kind: input, shape index: {}]
  %s2 = inlined_call_operand.vmem [shape: f32[16,1], index: 2, kind: input, shape index: {}]
  %s3 = inlined_call_operand.vmem [shape: f32[16,1], index: 3, kind: input, shape index: {}]
  %s4 = inlined_call_operand.vmem [shape: bf16[32,16], index: 4, kind: input, shape index: {}]
  %s5 = inlined_call_operand.vmem [shape: f32[32,1], index: 5, kind: input, shape index: {}]
  %s6 = inlined_call_operand.hbm [shape: bf16[8,288], index: 6, kind: input, shape index: {}]
  %s7 = inlined_call_operand.vmem [shape: f32[9,256], index: 7, kind: input, shape index: {}]
  %s8 = inlined_call_operand.hbm [shape: f32[2,8,256], index: 8, kind: output, shape index: {}]
  %s9 = sld [smem:[#allocation0]]
  $region69: #{tpu_custom_call.1} parent=0
    _
  %s11 = ssub.s32 1, %s9
  %s12 = scalar_select 0, %s11, %s9
  $region1: #{tpu_custom_call.1} parent=0
    #allocation3 [shape = 'u8[6144]{0}', space=vmem, size = 0x1800, scoped, tag = 'input window, operand 6, single buffered']
    #allocation4 [shape = 's32[2]{0}', space=sflag, size = 0x8, scoped, tag = 'scoped memory for tpu_custom_call.1']
    #allocation5 [shape = 's32[2]{0}', space=sflag, size = 0x8, scoped, tag = 'scoped memory for tpu_custom_call.1']
    #allocation6 [shape = 'u8[16384]{0}', space=vmem, size = 0x4000, scoped, tag = 'output window, operand 0']
    %13 = vsyncpa [#allocation4], 0
    %14 = vsyncpa [#allocation5], 0
    %s15 = scalar_lea.sflag [#allocation5], 1
    %16 = vsyncpa %s15, 0
    loop: start=0, step=1, limit=4
    $region2: #{tpu_custom_call.1} parent=1 // loop_pre_header
      _
    $region3: #{tpu_custom_call.1} parent=1 // loop_header
      %s18 = sphi 0, %s22
      %p19 = scmp.ge.s32.totalorder %s18, 4
      %s28 = sphi 0, %s30
      %s31 = sphi 0, %s28
      %s32 = sphi 0, %s31
      %s48 = sphi 0, %s32
      %s54 = sphi 0, %s56
      %s57 = sphi 0, %s54
      %s58 = sphi 0, %s57
      %s74 = sphi 0, %s58
      %s78 = sphi 0, %s78
      %s80 = sphi 0, %s78
      %s81 = sphi 0, %s80
      %s95 = sphi 0, %s81
      %s99 = sphi 0, %s99
      %s101 = sphi 0, %s99
      %s102 = sphi 0, %s101
      %s116 = sphi 0, %s102
      %s120 = sphi 0, %s120
      %s122 = sphi 0, %s120
      %s123 = sphi 0, %s122
      %s137 = sphi 0, %s123
      %s141 = sphi 0, %s141
      %s143 = sphi 0, %s141
      %s144 = sphi 0, %s143
      %s158 = sphi 0, %s144
      %s162 = sphi 0, %s162
      %s164 = sphi 0, %s162
      %s165 = sphi 0, %s164
      %s179 = sphi 0, %s165
      %s183 = sphi 0, %s183
      %s185 = sphi 0, %s183
      %s186 = sphi 0, %s185
      %s200 = sphi 0, %s186
      %s206 = sphi 0, %s208
      %s209 = sphi 0, %s206
      %s210 = sphi 0, %s209
      %s226 = sphi 0, %s210
    $region4: #{tpu_custom_call.1} parent=1 // loop_header_branch
      %21 = sbr.rel (%p19) target = $region8
    $region5: #{tpu_custom_call.1} parent=1 // loop_body
      %s23 = ssub.s32 %s18, 1
      %s24 = ssub.s32 %s18, 2
      %s25 = sadd.s32 %s18, 1
      %s26 = ssub.s32 %s18, %s25
      %p27 = scmp.eq.s32.totalorder %s26, 0
      %s29 = sadd.s32 %s28, 1
      %s30 = scalar_select %p27, %s28, %s29
      %p33 = pneg %p27
      %p34 = scmp.eq.s32.totalorder %s18, 1
      %p35 = por %p33, %p34
      %p36 = scmp.ne.s32.totalorder %s28, %s31
      %p37 = scmp.eq.s32.totalorder %s18, 0
      %p38 = por %p36, %p37
      %p39 = scmp.ne.s32.totalorder %s28, %s31
      %p40 = scmp.eq.s32.totalorder %s23, 1
      %p41 = por %p39, %p40
      %p42 = scmp.ne.s32.totalorder %s31, %s32
      %p43 = scmp.eq.s32.totalorder %s23, 0
      %p44 = por %p42, %p43
      %p45 = scmp.ne.s32.totalorder %s31, %s32
      %p46 = scmp.eq.s32.totalorder %s24, 1
      %p47 = por %p45, %p46
      %p49 = scmp.ne.s32.totalorder %s32, %s48
      %p50 = scmp.eq.s32.totalorder %s24, 0
      %p51 = por %p49, %p50
      %s52 = ssub.s32 %s18, %s25
      %p53 = scmp.eq.s32.totalorder %s52, 0
      %s55 = sadd.s32 %s54, 1
      %s56 = scalar_select %p53, %s54, %s55
      %p59 = pneg %p53
      %p60 = scmp.eq.s32.totalorder %s18, 1
      %p61 = por %p59, %p60
      %p62 = scmp.ne.s32.totalorder %s54, %s57
      %p63 = scmp.eq.s32.totalorder %s18, 0
      %p64 = por %p62, %p63
      %p65 = scmp.ne.s32.totalorder %s54, %s57
      %p66 = scmp.eq.s32.totalorder %s23, 1
      %p67 = por %p65, %p66
      %p68 = scmp.ne.s32.totalorder %s57, %s58
      %p69 = scmp.eq.s32.totalorder %s23, 0
      %p70 = por %p68, %p69
      %p71 = scmp.ne.s32.totalorder %s57, %s58
      %p72 = scmp.eq.s32.totalorder %s24, 1
      %p73 = por %p71, %p72
      %p75 = scmp.ne.s32.totalorder %s58, %s74
      %p76 = scmp.eq.s32.totalorder %s24, 0
      %p77 = por %p75, %p76
      %s79 = sadd.s32 %s78, 1
      %p82 = scmp.eq.s32.totalorder %s18, 1
      %p83 = scmp.ne.s32.totalorder %s78, %s80
      %p84 = scmp.eq.s32.totalorder %s18, 0
      %p85 = por %p83, %p84
      %p86 = scmp.ne.s32.totalorder %s78, %s80
      %p87 = scmp.eq.s32.totalorder %s23, 1
      %p88 = por %p86, %p87
      %p89 = scmp.ne.s32.totalorder %s80, %s81
      %p90 = scmp.eq.s32.totalorder %s23, 0
      %p91 = por %p89, %p90
      %p92 = scmp.ne.s32.totalorder %s80, %s81
      %p93 = scmp.eq.s32.totalorder %s24, 1
      %p94 = por %p92, %p93
      %p96 = scmp.ne.s32.totalorder %s81, %s95
      %p97 = scmp.eq.s32.totalorder %s24, 0
      %p98 = por %p96, %p97
      %s100 = sadd.s32 %s99, 1
      %p103 = scmp.eq.s32.totalorder %s18, 1
      %p104 = scmp.ne.s32.totalorder %s99, %s101
      %p105 = scmp.eq.s32.totalorder %s18, 0
      %p106 = por %p104, %p105
      %p107 = scmp.ne.s32.totalorder %s99, %s101
      %p108 = scmp.eq.s32.totalorder %s23, 1
      %p109 = por %p107, %p108
      %p110 = scmp.ne.s32.totalorder %s101, %s102
      %p111 = scmp.eq.s32.totalorder %s23, 0
      %p112 = por %p110, %p111
      %p113 = scmp.ne.s32.totalorder %s101, %s102
      %p114 = scmp.eq.s32.totalorder %s24, 1
      %p115 = por %p113, %p114
      %p117 = scmp.ne.s32.totalorder %s102, %s116
      %p118 = scmp.eq.s32.totalorder %s24, 0
      %p119 = por %p117, %p118
      %s121 = sadd.s32 %s120, 1
      %p124 = scmp.eq.s32.totalorder %s18, 1
      %p125 = scmp.ne.s32.totalorder %s120, %s122
      %p126 = scmp.eq.s32.totalorder %s18, 0
      %p127 = por %p125, %p126
      %p128 = scmp.ne.s32.totalorder %s120, %s122
      %p129 = scmp.eq.s32.totalorder %s23, 1
      %p130 = por %p128, %p129
      %p131 = scmp.ne.s32.totalorder %s122, %s123
      %p132 = scmp.eq.s32.totalorder %s23, 0
      %p133 = por %p131, %p132
      %p134 = scmp.ne.s32.totalorder %s122, %s123
      %p135 = scmp.eq.s32.totalorder %s24, 1
      %p136 = por %p134, %p135
      %p138 = scmp.ne.s32.totalorder %s123, %s137
      %p139 = scmp.eq.s32.totalorder %s24, 0
      %p140 = por %p138, %p139
      %s142 = sadd.s32 %s141, 1
      %p145 = scmp.eq.s32.totalorder %s18, 1
      %p146 = scmp.ne.s32.totalorder %s141, %s143
      %p147 = scmp.eq.s32.totalorder %s18, 0
      %p148 = por %p146, %p147
      %p149 = scmp.ne.s32.totalorder %s141, %s143
      %p150 = scmp.eq.s32.totalorder %s23, 1
      %p151 = por %p149, %p150
      %p152 = scmp.ne.s32.totalorder %s143, %s144
      %p153 = scmp.eq.s32.totalorder %s23, 0
      %p154 = por %p152, %p153
      %p155 = scmp.ne.s32.totalorder %s143, %s144
      %p156 = scmp.eq.s32.totalorder %s24, 1
      %p157 = por %p155, %p156
      %p159 = scmp.ne.s32.totalorder %s144, %s158
      %p160 = scmp.eq.s32.totalorder %s24, 0
      %p161 = por %p159, %p160
      %s163 = sadd.s32 %s162, 1
      %p166 = scmp.eq.s32.totalorder %s18, 1
      %p167 = scmp.ne.s32.totalorder %s162, %s164
      %p168 = scmp.eq.s32.totalorder %s18, 0
      %p169 = por %p167, %p168
      %p170 = scmp.ne.s32.totalorder %s162, %s164
      %p171 = scmp.eq.s32.totalorder %s23, 1
      %p172 = por %p170, %p171
      %p173 = scmp.ne.s32.totalorder %s164, %s165
      %p174 = scmp.eq.s32.totalorder %s23, 0
      %p175 = por %p173, %p174
      %p176 = scmp.ne.s32.totalorder %s164, %s165
      %p177 = scmp.eq.s32.totalorder %s24, 1
      %p178 = por %p176, %p177
      %p180 = scmp.ne.s32.totalorder %s165, %s179
      %p181 = scmp.eq.s32.totalorder %s24, 0
      %p182 = por %p180, %p181
      %s184 = sadd.s32 %s183, 1
      %p187 = scmp.eq.s32.totalorder %s18, 1
      %p188 = scmp.ne.s32.totalorder %s183, %s185
      %p189 = scmp.eq.s32.totalorder %s18, 0
      %p190 = por %p188, %p189
      %p191 = scmp.ne.s32.totalorder %s183, %s185
      %p192 = scmp.eq.s32.totalorder %s23, 1
      %p193 = por %p191, %p192
      %p194 = scmp.ne.s32.totalorder %s185, %s186
      %p195 = scmp.eq.s32.totalorder %s23, 0
      %p196 = por %p194, %p195
      %p197 = scmp.ne.s32.totalorder %s185, %s186
      %p198 = scmp.eq.s32.totalorder %s24, 1
      %p199 = por %p197, %p198
      %p201 = scmp.ne.s32.totalorder %s186, %s200
      %p202 = scmp.eq.s32.totalorder %s24, 0
      %p203 = por %p201, %p202
      %s204 = ssub.s32 %s18, %s25
      %p205 = scmp.eq.s32.totalorder %s204, 0
      %s207 = sadd.s32 %s206, 1
      %s208 = scalar_select %p205, %s206, %s207
      %p211 = pneg %p205
      %p212 = scmp.eq.s32.totalorder %s18, 1
      %p213 = por %p211, %p212
      %p214 = scmp.ne.s32.totalorder %s206, %s209
      %p215 = scmp.eq.s32.totalorder %s18, 0
      %p216 = por %p214, %p215
      %p217 = scmp.ne.s32.totalorder %s206, %s209
      %p218 = scmp.eq.s32.totalorder %s23, 1
      %p219 = por %p217, %p218
      %p220 = scmp.ne.s32.totalorder %s209, %s210
      %p221 = scmp.eq.s32.totalorder %s23, 0
      %p222 = por %p220, %p221
      %p223 = scmp.ne.s32.totalorder %s209, %s210
      %p224 = scmp.eq.s32.totalorder %s24, 1
      %p225 = por %p223, %p224
      %p227 = scmp.ne.s32.totalorder %s210, %s226
      %p228 = scmp.eq.s32.totalorder %s24, 0
      %p229 = por %p227, %p228
      %p230 = scmp.le.s32.totalorder 1, %s18
      %p231 = scmp.lt.s32.totalorder %s18, 3
      %p232 = pnand %p230, %p231
      %p233 = pneg %p232
      // Predicated region
      $region9: #{tpu_custom_call.1} parent=5 // pred_check
        _
      $region10: #{tpu_custom_call.1} parent=5 // pred_check_branch
        %235 = sbr.rel (%p232) target = $region12
      $region11: #{tpu_custom_call.1} parent=5 // pred_region
        %s236 = ssub.s32 %s18, 1
        // Predicated region
        $region13: #{tpu_custom_call.1} parent=11 // pred_check
          %p237 = pneg %p91
        $region14: #{tpu_custom_call.1} parent=11 // pred_check_branch
          %239 = sbr.rel (%p237) target = $region16
        $region15: #{tpu_custom_call.1} parent=11 // pred_region
          _
        $region16: #{tpu_custom_call.1} parent=11 // pred_fallthru
          _
        // Predicated region
        $region17: #{tpu_custom_call.1} parent=11 // pred_check
          %p240 = pneg %p112
        $region18: #{tpu_custom_call.1} parent=11 // pred_check_branch
          %242 = sbr.rel (%p240) target = $region20
        $region19: #{tpu_custom_call.1} parent=11 // pred_region
          _
        $region20: #{tpu_custom_call.1} parent=11 // pred_fallthru
          _
        // Predicated region
        $region21: #{tpu_custom_call.1} parent=11 // pred_check
          %p243 = pneg %p133
        $region22: #{tpu_custom_call.1} parent=11 // pred_check_branch
          %245 = sbr.rel (%p243) target = $region24
        $region23: #{tpu_custom_call.1} parent=11 // pred_region
          _
        $region24: #{tpu_custom_call.1} parent=11 // pred_fallthru
          _
        // Predicated region
        $region25: #{tpu_custom_call.1} parent=11 // pred_check
          %p246 = pneg %p154
        $region26: #{tpu_custom_call.1} parent=11 // pred_check_branch
          %248 = sbr.rel (%p246) target = $region28
        $region27: #{tpu_custom_call.1} parent=11 // pred_region
          _
        $region28: #{tpu_custom_call.1} parent=11 // pred_fallthru
          _
        // Predicated region
        $region29: #{tpu_custom_call.1} parent=11 // pred_check
          %p249 = pneg %p175
        $region30: #{tpu_custom_call.1} parent=11 // pred_check_branch
          %251 = sbr.rel (%p249) target = $region32
        $region31: #{tpu_custom_call.1} parent=11 // pred_region
          %s253 = ssub.s32 192, 192
          %254 = vsyncadd [#allocation4], %s253
          %s256 = sshll.u32 [#allocation3], 4
          %s257 = int_to_ptr.vmem [resolvable:$true] %s256
          %259 = dma.hbm_to_vmem [thread:$0]  %s6, 192, %s257, [#allocation4]
        $region32: #{tpu_custom_call.1} parent=11 // pred_fallthru
          _
        // Predicated region
        $region33: #{tpu_custom_call.1} parent=11 // pred_check
          %p260 = pneg %p196
        $region34: #{tpu_custom_call.1} parent=11 // pred_check_branch
          %262 = sbr.rel (%p260) target = $region36
        $region35: #{tpu_custom_call.1} parent=11 // pred_region
          _
        $region36: #{tpu_custom_call.1} parent=11 // pred_fallthru
          _
      $region12: #{tpu_custom_call.1} parent=5 // pred_fallthru
        _
      %p263 = scmp.lt.s32.totalorder %s18, 2
      // Predicated region
      $region37: #{tpu_custom_call.1} parent=5 // pred_check
        %p264 = pneg %p263
      $region38: #{tpu_custom_call.1} parent=5 // pred_check_branch
        %266 = sbr.rel (%p264) target = $region40
      $region39: #{tpu_custom_call.1} parent=5 // pred_region
        // Predicated region
        $region41: #{tpu_custom_call.1} parent=39 // pred_check
          %p267 = pneg %p38
        $region42: #{tpu_custom_call.1} parent=39 // pred_check_branch
          %269 = sbr.rel (%p267) target = $region44
        $region43: #{tpu_custom_call.1} parent=39 // pred_region
          %p270 = scmp.lt.s32.totalorder %s18, 1
          %s271 = scalar_select %p270, %s18, 1
          %s272 = smul.addr %s271, 2
          %s273 = smul.addr %s272, 8
          %s274 = scalar_lea.vmem %s0, %s273
        $region44: #{tpu_custom_call.1} parent=39 // pred_fallthru
          _
        // Predicated region
        $region45: #{tpu_custom_call.1} parent=39 // pred_check
          %p275 = pneg %p64
        $region46: #{tpu_custom_call.1} parent=39 // pred_check_branch
          %277 = sbr.rel (%p275) target = $region48
        $region47: #{tpu_custom_call.1} parent=39 // pred_region
          %p278 = scmp.lt.s32.totalorder %s18, 1
          %s279 = scalar_select %p278, %s18, 1
          %s280 = smul.addr %s279, 2
          %s281 = smul.addr %s280, 8
          %s282 = scalar_lea.vmem %s1, %s281
        $region48: #{tpu_custom_call.1} parent=39 // pred_fallthru
          _
      $region40: #{tpu_custom_call.1} parent=5 // pred_fallthru
        _
      %p283 = scmp.le.s32.totalorder 1, %s18
      %p284 = scmp.lt.s32.totalorder %s18, 3
      %p285 = pnand %p283, %p284
      %p286 = pneg %p285
      // Predicated region
      $region49: #{tpu_custom_call.1} parent=5 // pred_check
        _
      $region50: #{tpu_custom_call.1} parent=5 // pred_check_branch
        %288 = sbr.rel (%p285) target = $region52
      $region51: #{tpu_custom_call.1} parent=5 // pred_region
        %s289 = ssub.s32 %s18, 1
        // Predicated region
        $region53: #{tpu_custom_call.1} parent=51 // pred_check
          %p290 = pneg %p175
        $region54: #{tpu_custom_call.1} parent=51 // pred_check_branch
          %292 = sbr.rel (%p290) target = $region56
        $region55: #{tpu_custom_call.1} parent=51 // pred_region
          %293 = dma.done [#allocation4], 192
        $region56: #{tpu_custom_call.1} parent=51 // pred_fallthru
          _
        %p294 = scmp.lt.s32.totalorder %s23, 1
        %s295 = scalar_select %p294, %s23, 1
        %s296 = smul.addr %s295, 2
        %s297 = smul.addr %s296, 8
        %s298 = scalar_lea.vmem %s0, %s297
        %p299 = pneg %p44
        %p300 = pneg %p41
        %p301 = scmp.lt.s32.totalorder %s23, 1
        %s302 = scalar_select %p301, %s23, 1
        %s303 = smul.addr %s302, 2
        %s304 = smul.addr %s303, 8
        %s305 = scalar_lea.vmem %s1, %s304
        %p306 = pneg %p70
        %p307 = pneg %p67
        %p308 = pneg %p91
        %p309 = pneg %p88
        %p310 = pneg %p112
        %p311 = pneg %p109
        %p312 = pneg %p133
        %p313 = pneg %p130
        %p314 = pneg %p154
        %p315 = pneg %p151
        %p316 = pneg %p175
        %p317 = pneg %p172
        %p318 = pneg %p196
        %p319 = pneg %p193
        %p320 = pneg %p222
        %p321 = pneg %p219
        %s322 = sand.u32 %s209, 1
        %s323 = scalar_lea.sflag [#allocation5], %s322
        %s324 = sand.u32 %s209, 1
        %s325 = smul.addr %s324, 16
        %s326 = scalar_lea.vmem [#allocation6], %s325
        %p327 = scmp.lt.s32.totalorder %s23, 1
        %s328 = scalar_select %p327, %s23, 1
        %s329 = smul.addr %s328, 2
        %s330 = smul.addr %s329, 8
        %s331 = scalar_lea.vmem %s0, %s330
        %p332 = scmp.lt.s32.totalorder %s23, 1
        %s333 = scalar_select %p332, %s23, 1
        %s334 = smul.addr %s333, 2
        %s335 = smul.addr %s334, 8
        %s336 = scalar_lea.vmem %s1, %s335
        %v338 = vld [vmem:[%s2] sm:$0xff]
        %v339 = vld [vmem:[%s2 + $0x8] sm:$0xff]
        %v340 = vld [vmem:[%s3] sm:$0xff]
        %v341 = vld [vmem:[%s3 + $0x8] sm:$0xff]
        %v342 = vld [vmem:[%s4] sm:$0xf]
        %v343 = vld [vmem:[%s4 + $0x4] sm:$0xf]
        %v344 = vld [vmem:[%s4 + $0x8] sm:$0xf]
        %v345 = vld [vmem:[%s4 + $0xc] sm:$0xf]
        %v346 = vld [vmem:[%s5] sm:$0xff]
        %v347 = vld [vmem:[%s5 + $0x8] sm:$0xff]
        %v348 = vld [vmem:[%s5 + $0x10] sm:$0xff]
        %v349 = vld [vmem:[%s5 + $0x18] sm:$0xff]
        %v350 = vld [vmem:[#allocation3] sm:$0xff]
        %v351 = vld [vmem:[#allocation3 + $0x8] sm:$0xf]
        %v352 = vld [vmem:[%s7] sm:$0xff]
        %v353 = vld [vmem:[%s7 + $0x8] sm:$0xff]
        %v354 = vld [vmem:[%s7 + $0x10] sm:$0x1]
        %v355 = vld [vmem:[%s7 + $0x18] sm:$0x1]
        %v356 = vld [vmem:[%s331] sm:$0xff]
        %v357 = vld [vmem:[%s331 + $0x8] sm:$0xff]
        %v358 = vld [vmem:[%s336] sm:$0xff]
        %v359 = vld [vmem:[%s336 + $0x8] sm:$0xff]
        %361 = vset.pattern.permute.xlu0 0
        %362 = vperm.xlu0 %361, %v338
        %v363 = vpop.permute.xlu0 %362
        %366 = vset.pattern.permute.xlu0 0
        %367 = vperm.xlu0 %366, %v339
        %v368 = vpop.permute.xlu0 %367
        %v370 = vmul.f32 %v356, %v363
        %v371 = vmul.f32 %v357, %v363
        %v372 = vmul.f32 %v358, %v368
        %v373 = vmul.f32 %v359, %v368
        %375 = vset.pattern.permute.xlu0 0
        %376 = vperm.xlu0 %375, %v340
        %v377 = vpop.permute.xlu0 %376
        %380 = vset.pattern.permute.xlu0 0
        %381 = vperm.xlu0 %380, %v341
        %v382 = vpop.permute.xlu0 %381
        %v384 = vadd.f32 %v370, %v377
        %v385 = vadd.f32 %v371, %v377
        %v386 = vadd.f32 %v372, %v382
        %v387 = vadd.f32 %v373, %v382
        %v388 = vmax.f32 %v384, 0.0
        %v389 = vmax.f32 %v385, 0.0
        %v390 = vmax.f32 %v386, 0.0
        %v391 = vmax.f32 %v387, 0.0
        %v392 = vpack.c.bf16 %v390, %v388
        %v393 = vpack.c.bf16 %v391, %v389
        %395 = vset.pattern.permute.xlu0 0
        %396 = vperm.xlu0 %395, %v346
        %v397 = vpop.permute.xlu0 %396
        %400 = vset.pattern.permute.xlu0 0
        %401 = vperm.xlu0 %400, %v347
        %v402 = vpop.permute.xlu0 %401
        %405 = vset.pattern.permute.xlu0 0
        %406 = vperm.xlu0 %405, %v348
        %v407 = vpop.permute.xlu0 %406
        %410 = vset.pattern.permute.xlu0 0
        %411 = vperm.xlu0 %410, %v349
        %v412 = vpop.permute.xlu0 %411
        %v418 = vunpack.c.l.b16 %v342
        %v419 = vunpack.c.l.b16 %v343
        %v420 = vunpack.c.l.b16 %v344
        %v421 = vunpack.c.l.b16 %v345
        %v422 = vpack.c.b16 %v419, %v418
        %v423 = vpack.c.b16 %v421, %v420
        %vm424 = vcmask 130048
        %v426 = vsel %vm424, %v422, 0
        %v429 = vsel %vm424, %v423, 0
        %431 = vmatprep.subr.bf16.mxu0 0
        %432 = vmatpush1.bf16.msra.mxu0 0
        %433 = vmatprep.subr.bf16.mxu0 0
        %434 = vmatpush1.bf16.msra.mxu0 0
        %435 = vmatprep.subr.bf16.mxu0 0
        %436 = vmatpush1.bf16.msra.mxu0 0
        %437 = vmatprep.subr.bf16.mxu0 0
        %438 = vmatpush1.bf16.msra.mxu0 0
        %439 = vmatprep.subr.bf16.mxu0 0
        %440 = vmatpush1.bf16.msra.mxu0 0
        %441 = vmatprep.subr.bf16.mxu0 0
        %442 = vmatpush1.bf16.msra.mxu0 0
        %443 = vmatprep.subr.bf16.mxu0 0
        %444 = vmatpush1.bf16.msra.mxu0 0
        %445 = vmatprep.subr.bf16.mxu0 %v393
        %446 = vmatpush1.bf16.msra.mxu0 %v392
        %447 = vmatprep.subr.bf16.mxu0 0
        %448 = vmatpush2.bf16.msra.mxu0 0
        %449 = vmatprep.subr.bf16.mxu0 0
        %450 = vmatpush2.bf16.msra.mxu0 0
        %451 = vmatprep.subr.bf16.mxu0 0
        %452 = vmatpush2.bf16.msra.mxu0 0
        %453 = vmatprep.subr.bf16.mxu0 0
        %454 = vmatpush2.bf16.msra.mxu0 0
        %455 = vmatprep.subr.bf16.mxu0 0
        %456 = vmatpush2.bf16.msra.mxu0 0
        %457 = vmatprep.subr.bf16.mxu0 0
        %458 = vmatpush2.bf16.msra.mxu0 0
        %459 = vmatprep.subr.bf16.mxu0 0
        %460 = vmatpush2.bf16.msra.mxu0 0
        %461 = vmatprep.subr.bf16.mxu0 0
        %462 = vmatpush2.bf16.msra.mxu0 0
        %463 = vmatprep.mubr.bf16.mxu0 0
        %464 = vmatmul.mubr.bf16.gmra.mxu0 %v426
        %v465 = vpop.f32.mrf.mxu0
        %v466 = vadd.f32 %v397, %v465
        %v467 = vpop.f32.mrf.mxu0
        %v468 = vadd.f32 %v397, %v467
        %v469 = vpop.f32.mrf.mxu0
        %v470 = vadd.f32 %v402, %v469
        %v471 = vpop.f32.mrf.mxu0
        %v472 = vadd.f32 %v402, %v471
        %473 = vmatprep.mubr.bf16.mxu0 0
        %474 = vmatmul.mubr.bf16.gmra.mxu0 %v429
        %v475 = vpop.f32.mrf.mxu0
        %v476 = vadd.f32 %v407, %v475
        %v477 = vpop.f32.mrf.mxu0
        %v478 = vadd.f32 %v407, %v477
        %v479 = vpop.f32.mrf.mxu0
        %v480 = vadd.f32 %v412, %v479
        %v481 = vpop.f32.mrf.mxu0
        %v482 = vadd.f32 %v412, %v481
        %483 = vdwg.mxu0
        %v484 = vmax.f32 %v466, 0.0
        %v485 = vmax.f32 %v468, 0.0
        %v486 = vmax.f32 %v470, 0.0
        %v487 = vmax.f32 %v472, 0.0
        %v488 = vmax.f32 %v476, 0.0
        %v489 = vmax.f32 %v478, 0.0
        %v490 = vmax.f32 %v480, 0.0
        %v491 = vmax.f32 %v482, 0.0
        %492 = vrot.lane.b32.xlu0 %v484, 17
        %v493 = vpop.permute.xlu0 %492
        %494 = vrot.lane.b32.xlu0 %v486, 17
        %v495 = vpop.permute.xlu0 %494
        %496 = vrot.lane.b32.xlu0 %v488, 17
        %v497 = vpop.permute.xlu0 %496
        %498 = vrot.lane.b32.xlu0 %v490, 17
        %v499 = vpop.permute.xlu0 %498
        %500 = vrot.lane.b32.xlu0 %v485, 17
        %v501 = vpop.permute.xlu0 %500
        %502 = vrot.lane.b32.xlu0 %v487, 17
        %v503 = vpop.permute.xlu0 %502
        %504 = vrot.lane.b32.xlu0 %v489, 17
        %v505 = vpop.permute.xlu0 %504
        %506 = vrot.lane.b32.xlu0 %v491, 17
        %v507 = vpop.permute.xlu0 %506
        %v508 = vlaneseq
        %v509 = vand.u32 %v508, 127
        %vm510 = vcmp.lt.s32.totalorder %v509, 17
        %v511 = vsel %vm510, %v493, %v501
        %v512 = vsel %vm510, %v495, %v503
        %v513 = vsel %vm510, %v497, %v505
        %v514 = vsel %vm510, %v499, %v507
        %v515 = vsel %vm510, %v501, %v493
        %v516 = vsel %vm510, %v503, %v495
        %v517 = vsel %vm510, %v505, %v497
        %v518 = vsel %vm510, %v507, %v499
        %v519 = vlaneseq
        %v520 = vshrl.u32 %v519, 7
        %v521 = vsub.s32 0, %v520
        %v522 = vrot.slane %v352, %v521
        %v523 = vlaneseq
        %v524 = vshrl.u32 %v523, 7
        %v525 = vsub.s32 0, %v524
        %v526 = vrot.slane %v353, %v525
        %v527 = vmul.f32 %v515, %v522
        %v528 = vmul.f32 %v511, %v526
        %v529 = vmul.f32 %v516, %v522
        %v530 = vmul.f32 %v512, %v526
        %v531 = vmul.f32 %v517, %v522
        %v532 = vmul.f32 %v513, %v526
        %v533 = vmul.f32 %v518, %v522
        %v534 = vmul.f32 %v514, %v526
        %v535 = vpack.c.bf16 %v529, %v527
        %v536 = vpack.c.bf16 %v530, %v528
        %v537 = vpack.c.bf16 %v533, %v531
        %v538 = vpack.c.bf16 %v534, %v532
        %v543 = vunpack.c.l.b16 %v535
        %v544 = vunpack.c.l.b16 %v536
        %v545 = vunpack.c.h.b16 %v535
        %v546 = vunpack.c.h.b16 %v536
        %v547 = vunpack.c.l.b16 %v537
        %v548 = vunpack.c.l.b16 %v538
        %v549 = vunpack.c.h.b16 %v537
        %v550 = vunpack.c.h.b16 %v538
        %v551 = vpack.c.b16 %v544, %v543
        %v552 = vpack.c.b16 %v546, %v545
        %v553 = vpack.c.b16 %v548, %v547
        %v554 = vpack.c.b16 %v550, %v549
        %559 = vst [vmem:[#allocation2] sm:$0xff] %v551
        %560 = vst [vmem:[#allocation2 + $0x8] sm:$0xff] %v552
        %561 = vst [vmem:[#allocation2 + $0x10] sm:$0xff] %v553
        %562 = vst [vmem:[#allocation2 + $0x18] sm:$0xff] %v554
        %563 = vrot.lane.b32.xlu0 %v484, 16
        %v564 = vpop.permute.xlu0 %563
        %565 = vrot.lane.b32.xlu0 %v486, 16
        %v566 = vpop.permute.xlu0 %565
        %567 = vrot.lane.b32.xlu0 %v488, 16
        %v568 = vpop.permute.xlu0 %567
        %569 = vrot.lane.b32.xlu0 %v490, 16
        %v570 = vpop.permute.xlu0 %569
        %571 = vrot.lane.b32.xlu0 %v485, 16
        %v572 = vpop.permute.xlu0 %571
        %573 = vrot.lane.b32.xlu0 %v487, 16
        %v574 = vpop.permute.xlu0 %573
        %575 = vrot.lane.b32.xlu0 %v489, 16
        %v576 = vpop.permute.xlu0 %575
        %577 = vrot.lane.b32.xlu0 %v491, 16
        %v578 = vpop.permute.xlu0 %577
        %vm579 = vcmp.lt.s32.totalorder %v509, 16
        %v580 = vsel %vm579, %v564, %v572
        %v581 = vsel %vm579, %v566, %v574
        %v582 = vsel %vm579, %v568, %v576
        %v583 = vsel %vm579, %v570, %v578
        %v584 = vsel %vm579, %v572, %v564
        %v585 = vsel %vm579, %v574, %v566
        %v586 = vsel %vm579, %v576, %v568
        %v587 = vsel %vm579, %v578, %v570
        %v588 = vlaneseq
        %v589 = vshrl.u32 %v588, 7
        %v590 = vsub.s32 1, %v589
        %v591 = vrot.slane %v352, %v590
        %v592 = vlaneseq
        %v593 = vshrl.u32 %v592, 7
        %v594 = vsub.s32 1, %v593
        %v595 = vrot.slane %v353, %v594
        %v596 = vmul.f32 %v584, %v591
        %v597 = vmul.f32 %v580, %v595
        %v598 = vmul.f32 %v585, %v591
        %v599 = vmul.f32 %v581, %v595
        %v600 = vmul.f32 %v586, %v591
        %v601 = vmul.f32 %v582, %v595
        %v602 = vmul.f32 %v587, %v591
        %v603 = vmul.f32 %v583, %v595
        %v604 = vpack.c.bf16 %v598, %v596
        %v605 = vpack.c.bf16 %v599, %v597
        %v606 = vpack.c.bf16 %v602, %v600
        %v607 = vpack.c.bf16 %v603, %v601
        %v612 = vunpack.c.l.b16 %v604
        %v613 = vunpack.c.l.b16 %v605
        %v614 = vunpack.c.h.b16 %v604
        %v615 = vunpack.c.h.b16 %v605
        %v616 = vunpack.c.l.b16 %v606
        %v617 = vunpack.c.l.b16 %v607
        %v618 = vunpack.c.h.b16 %v606
        %v619 = vunpack.c.h.b16 %v607
        %v620 = vpack.c.b16 %v613, %v612
        %v621 = vpack.c.b16 %v615, %v614
        %v622 = vpack.c.b16 %v617, %v616
        %v623 = vpack.c.b16 %v619, %v618
        %628 = vst [vmem:[#allocation2 + $0x20] sm:$0xff] %v620
        %629 = vst [vmem:[#allocation2 + $0x28] sm:$0xff] %v621
        %630 = vst [vmem:[#allocation2 + $0x30] sm:$0xff] %v622
        %631 = vst [vmem:[#allocation2 + $0x38] sm:$0xff] %v623
        %632 = vrot.lane.b32.xlu0 %v484, 15
        %v633 = vpop.permute.xlu0 %632
        %634 = vrot.lane.b32.xlu0 %v486, 15
        %v635 = vpop.permute.xlu0 %634
        %636 = vrot.lane.b32.xlu0 %v488, 15
        %v637 = vpop.permute.xlu0 %636
        %638 = vrot.lane.b32.xlu0 %v490, 15
        %v639 = vpop.permute.xlu0 %638
        %640 = vrot.lane.b32.xlu0 %v485, 15
        %v641 = vpop.permute.xlu0 %640
        %642 = vrot.lane.b32.xlu0 %v487, 15
        %v643 = vpop.permute.xlu0 %642
        %644 = vrot.lane.b32.xlu0 %v489, 15
        %v645 = vpop.permute.xlu0 %644
        %646 = vrot.lane.b32.xlu0 %v491, 15
        %v647 = vpop.permute.xlu0 %646
        %vm648 = vcmp.lt.s32.totalorder %v509, 15
        %v649 = vsel %vm648, %v633, %v641
        %v650 = vsel %vm648, %v635, %v643
        %v651 = vsel %vm648, %v637, %v645
        %v652 = vsel %vm648, %v639, %v647
        %v653 = vsel %vm648, %v641, %v633
        %v654 = vsel %vm648, %v643, %v635
        %v655 = vsel %vm648, %v645, %v637
        %v656 = vsel %vm648, %v647, %v639
        %v657 = vlaneseq
        %v658 = vshrl.u32 %v657, 7
        %v659 = vsub.s32 2, %v658
        %v660 = vrot.slane %v352, %v659
        %v661 = vlaneseq
        %v662 = vshrl.u32 %v661, 7
        %v663 = vsub.s32 2, %v662
        %v664 = vrot.slane %v353, %v663
        %v665 = vmul.f32 %v653, %v660
        %v666 = vmul.f32 %v649, %v664
        %v667 = vmul.f32 %v654, %v660
        %v668 = vmul.f32 %v650, %v664
        %v669 = vmul.f32 %v655, %v660
        %v670 = vmul.f32 %v651, %v664
        %v671 = vmul.f32 %v656, %v660
        %v672 = vmul.f32 %v652, %v664
        %v673 = vpack.c.bf16 %v667, %v665
        %v674 = vpack.c.bf16 %v668, %v666
        %v675 = vpack.c.bf16 %v671, %v669
        %v676 = vpack.c.bf16 %v672, %v670
        %v681 = vunpack.c.l.b16 %v673
        %v682 = vunpack.c.l.b16 %v674
        %v683 = vunpack.c.h.b16 %v673
        %v684 = vunpack.c.h.b16 %v674
        %v685 = vunpack.c.l.b16 %v675
        %v686 = vunpack.c.l.b16 %v676
        %v687 = vunpack.c.h.b16 %v675
        %v688 = vunpack.c.h.b16 %v676
        %v689 = vpack.c.b16 %v682, %v681
        %v690 = vpack.c.b16 %v684, %v683
        %v691 = vpack.c.b16 %v686, %v685
        %v692 = vpack.c.b16 %v688, %v687
        %697 = vst [vmem:[#allocation2 + $0x40] sm:$0xff] %v689
        %698 = vst [vmem:[#allocation2 + $0x48] sm:$0xff] %v690
        %699 = vst [vmem:[#allocation2 + $0x50] sm:$0xff] %v691
        %700 = vst [vmem:[#allocation2 + $0x58] sm:$0xff] %v692
        %701 = vrot.lane.b32.xlu0 %v484, 1
        %v702 = vpop.permute.xlu0 %701
        %703 = vrot.lane.b32.xlu0 %v486, 1
        %v704 = vpop.permute.xlu0 %703
        %705 = vrot.lane.b32.xlu0 %v488, 1
        %v706 = vpop.permute.xlu0 %705
        %707 = vrot.lane.b32.xlu0 %v490, 1
        %v708 = vpop.permute.xlu0 %707
        %709 = vrot.lane.b32.xlu0 %v485, 1
        %v710 = vpop.permute.xlu0 %709
        %711 = vrot.lane.b32.xlu0 %v487, 1
        %v712 = vpop.permute.xlu0 %711
        %713 = vrot.lane.b32.xlu0 %v489, 1
        %v714 = vpop.permute.xlu0 %713
        %715 = vrot.lane.b32.xlu0 %v491, 1
        %v716 = vpop.permute.xlu0 %715
        %vm717 = vcmp.lt.s32.totalorder %v509, 1
        %v718 = vsel %vm717, %v702, %v710
        %v719 = vsel %vm717, %v704, %v712
        %v720 = vsel %vm717, %v706, %v714
        %v721 = vsel %vm717, %v708, %v716
        %v722 = vsel %vm717, %v710, %v702
        %v723 = vsel %vm717, %v712, %v704
        %v724 = vsel %vm717, %v714, %v706
        %v725 = vsel %vm717, %v716, %v708
        %v726 = vlaneseq
        %v727 = vshrl.u32 %v726, 7
        %v728 = vsub.s32 3, %v727
        %v729 = vrot.slane %v352, %v728
        %v730 = vlaneseq
        %v731 = vshrl.u32 %v730, 7
        %v732 = vsub.s32 3, %v731
        %v733 = vrot.slane %v353, %v732
        %v734 = vmul.f32 %v722, %v729
        %v735 = vmul.f32 %v718, %v733
        %v736 = vmul.f32 %v723, %v729
        %v737 = vmul.f32 %v719, %v733
        %v738 = vmul.f32 %v724, %v729
        %v739 = vmul.f32 %v720, %v733
        %v740 = vmul.f32 %v725, %v729
        %v741 = vmul.f32 %v721, %v733
        %v742 = vpack.c.bf16 %v736, %v734
        %v743 = vpack.c.bf16 %v737, %v735
        %v744 = vpack.c.bf16 %v740, %v738
        %v745 = vpack.c.bf16 %v741, %v739
        %v750 = vunpack.c.l.b16 %v742
        %v751 = vunpack.c.l.b16 %v743
        %v752 = vunpack.c.h.b16 %v742
        %v753 = vunpack.c.h.b16 %v743
        %v754 = vunpack.c.l.b16 %v744
        %v755 = vunpack.c.l.b16 %v745
        %v756 = vunpack.c.h.b16 %v744
        %v757 = vunpack.c.h.b16 %v745
        %v758 = vpack.c.b16 %v751, %v750
        %v759 = vpack.c.b16 %v753, %v752
        %v760 = vpack.c.b16 %v755, %v754
        %v761 = vpack.c.b16 %v757, %v756
        %766 = vst [vmem:[#allocation2 + $0x60] sm:$0xff] %v758
        %767 = vst [vmem:[#allocation2 + $0x68] sm:$0xff] %v759
        %768 = vst [vmem:[#allocation2 + $0x70] sm:$0xff] %v760
        %769 = vst [vmem:[#allocation2 + $0x78] sm:$0xff] %v761
        %v770 = vpack.c.bf16 %v486, %v484
        %v771 = vpack.c.bf16 %v487, %v485
        %v772 = vpack.c.bf16 %v490, %v488
        %v773 = vpack.c.bf16 %v491, %v489
        %v778 = vunpack.c.l.b16 %v770
        %v779 = vunpack.c.l.b16 %v771
        %v780 = vunpack.c.h.b16 %v770
        %v781 = vunpack.c.h.b16 %v771
        %v782 = vunpack.c.l.b16 %v772
        %v783 = vunpack.c.l.b16 %v773
        %v784 = vunpack.c.h.b16 %v772
        %v785 = vunpack.c.h.b16 %v773
        %v786 = vpack.c.b16 %v779, %v778
        %v787 = vpack.c.b16 %v781, %v780
        %v788 = vpack.c.b16 %v783, %v782
        %v789 = vpack.c.b16 %v785, %v784
        %794 = vst [vmem:[#allocation2 + $0x80] sm:$0xff] %v786
        %795 = vst [vmem:[#allocation2 + $0x88] sm:$0xff] %v787
        %796 = vst [vmem:[#allocation2 + $0x90] sm:$0xff] %v788
        %797 = vst [vmem:[#allocation2 + $0x98] sm:$0xff] %v789
        %798 = vrot.lane.b32.xlu0 %v484, 127
        %v799 = vpop.permute.xlu0 %798
        %800 = vrot.lane.b32.xlu0 %v486, 127
        %v801 = vpop.permute.xlu0 %800
        %802 = vrot.lane.b32.xlu0 %v488, 127
        %v803 = vpop.permute.xlu0 %802
        %804 = vrot.lane.b32.xlu0 %v490, 127
        %v805 = vpop.permute.xlu0 %804
        %806 = vrot.lane.b32.xlu0 %v485, 127
        %v807 = vpop.permute.xlu0 %806
        %808 = vrot.lane.b32.xlu0 %v487, 127
        %v809 = vpop.permute.xlu0 %808
        %810 = vrot.lane.b32.xlu0 %v489, 127
        %v811 = vpop.permute.xlu0 %810
        %812 = vrot.lane.b32.xlu0 %v491, 127
        %v813 = vpop.permute.xlu0 %812
        %vm814 = vcmp.lt.s32.totalorder %v509, 127
        %v815 = vsel %vm814, %v799, %v807
        %v816 = vsel %vm814, %v801, %v809
        %v817 = vsel %vm814, %v803, %v811
        %v818 = vsel %vm814, %v805, %v813
        %v819 = vsel %vm814, %v807, %v799
        %v820 = vsel %vm814, %v809, %v801
        %v821 = vsel %vm814, %v811, %v803
        %v822 = vsel %vm814, %v813, %v805
        %v823 = vlaneseq
        %v824 = vshrl.u32 %v823, 7
        %v825 = vsub.s32 5, %v824
        %v826 = vrot.slane %v352, %v825
        %v827 = vlaneseq
        %v828 = vshrl.u32 %v827, 7
        %v829 = vsub.s32 5, %v828
        %v830 = vrot.slane %v353, %v829
        %v831 = vmul.f32 %v815, %v826
        %v832 = vmul.f32 %v819, %v830
        %v833 = vmul.f32 %v816, %v826
        %v834 = vmul.f32 %v820, %v830
        %v835 = vmul.f32 %v817, %v826
        %v836 = vmul.f32 %v821, %v830
        %v837 = vmul.f32 %v818, %v826
        %v838 = vmul.f32 %v822, %v830
        %v839 = vpack.c.bf16 %v833, %v831
        %v840 = vpack.c.bf16 %v834, %v832
        %v841 = vpack.c.bf16 %v837, %v835
        %v842 = vpack.c.bf16 %v838, %v836
        %v847 = vunpack.c.l.b16 %v839
        %v848 = vunpack.c.l.b16 %v840
        %v849 = vunpack.c.h.b16 %v839
        %v850 = vunpack.c.h.b16 %v840
        %v851 = vunpack.c.l.b16 %v841
        %v852 = vunpack.c.l.b16 %v842
        %v853 = vunpack.c.h.b16 %v841
        %v854 = vunpack.c.h.b16 %v842
        %v855 = vpack.c.b16 %v848, %v847
        %v856 = vpack.c.b16 %v850, %v849
        %v857 = vpack.c.b16 %v852, %v851
        %v858 = vpack.c.b16 %v854, %v853
        %863 = vst [vmem:[#allocation2 + $0xa0] sm:$0xff] %v855
        %864 = vst [vmem:[#allocation2 + $0xa8] sm:$0xff] %v856
        %865 = vst [vmem:[#allocation2 + $0xb0] sm:$0xff] %v857
        %866 = vst [vmem:[#allocation2 + $0xb8] sm:$0xff] %v858
        %867 = vrot.lane.b32.xlu0 %v484, 113
        %v868 = vpop.permute.xlu0 %867
        %869 = vrot.lane.b32.xlu0 %v486, 113
        %v870 = vpop.permute.xlu0 %869
        %871 = vrot.lane.b32.xlu0 %v488, 113
        %v872 = vpop.permute.xlu0 %871
        %873 = vrot.lane.b32.xlu0 %v490, 113
        %v874 = vpop.permute.xlu0 %873
        %875 = vrot.lane.b32.xlu0 %v485, 113
        %v876 = vpop.permute.xlu0 %875
        %877 = vrot.lane.b32.xlu0 %v487, 113
        %v878 = vpop.permute.xlu0 %877
        %879 = vrot.lane.b32.xlu0 %v489, 113
        %v880 = vpop.permute.xlu0 %879
        %881 = vrot.lane.b32.xlu0 %v491, 113
        %v882 = vpop.permute.xlu0 %881
        %vm883 = vcmp.lt.s32.totalorder %v509, 113
        %v884 = vsel %vm883, %v868, %v876
        %v885 = vsel %vm883, %v870, %v878
        %v886 = vsel %vm883, %v872, %v880
        %v887 = vsel %vm883, %v874, %v882
        %v888 = vsel %vm883, %v876, %v868
        %v889 = vsel %vm883, %v878, %v870
        %v890 = vsel %vm883, %v880, %v872
        %v891 = vsel %vm883, %v882, %v874
        %v892 = vlaneseq
        %v893 = vshrl.u32 %v892, 7
        %v894 = vsub.s32 6, %v893
        %v895 = vrot.slane %v352, %v894
        %v896 = vlaneseq
        %v897 = vshrl.u32 %v896, 7
        %v898 = vsub.s32 6, %v897
        %v899 = vrot.slane %v353, %v898
        %v900 = vmul.f32 %v884, %v895
        %v901 = vmul.f32 %v888, %v899
        %v902 = vmul.f32 %v885, %v895
        %v903 = vmul.f32 %v889, %v899
        %v904 = vmul.f32 %v886, %v895
        %v905 = vmul.f32 %v890, %v899
        %v906 = vmul.f32 %v887, %v895
        %v907 = vmul.f32 %v891, %v899
        %v908 = vpack.c.bf16 %v902, %v900
        %v909 = vpack.c.bf16 %v903, %v901
        %v910 = vpack.c.bf16 %v906, %v904
        %v911 = vpack.c.bf16 %v907, %v905
        %v916 = vunpack.c.l.b16 %v908
        %v917 = vunpack.c.l.b16 %v909
        %v918 = vunpack.c.h.b16 %v908
        %v919 = vunpack.c.h.b16 %v909
        %v920 = vunpack.c.l.b16 %v910
        %v921 = vunpack.c.l.b16 %v911
        %v922 = vunpack.c.h.b16 %v910
        %v923 = vunpack.c.h.b16 %v911
        %v924 = vpack.c.b16 %v917, %v916
        %v925 = vpack.c.b16 %v919, %v918
        %v926 = vpack.c.b16 %v921, %v920
        %v927 = vpack.c.b16 %v923, %v922
        %932 = vst [vmem:[#allocation2 + $0xc0] sm:$0xff] %v924
        %933 = vst [vmem:[#allocation2 + $0xc8] sm:$0xff] %v925
        %934 = vst [vmem:[#allocation2 + $0xd0] sm:$0xff] %v926
        %935 = vst [vmem:[#allocation2 + $0xd8] sm:$0xff] %v927
        %936 = vrot.lane.b32.xlu0 %v484, 112
        %v937 = vpop.permute.xlu0 %936
        %938 = vrot.lane.b32.xlu0 %v486, 112
        %v939 = vpop.permute.xlu0 %938
        %940 = vrot.lane.b32.xlu0 %v488, 112
        %v941 = vpop.permute.xlu0 %940
        %942 = vrot.lane.b32.xlu0 %v490, 112
        %v943 = vpop.permute.xlu0 %942
        %944 = vrot.lane.b32.xlu0 %v485, 112
        %v945 = vpop.permute.xlu0 %944
        %946 = vrot.lane.b32.xlu0 %v487, 112
        %v947 = vpop.permute.xlu0 %946
        %948 = vrot.lane.b32.xlu0 %v489, 112
        %v949 = vpop.permute.xlu0 %948
        %950 = vrot.lane.b32.xlu0 %v491, 112
        %v951 = vpop.permute.xlu0 %950
        %vm952 = vcmp.lt.s32.totalorder %v509, 112
        %v953 = vsel %vm952, %v937, %v945
        %v954 = vsel %vm952, %v939, %v947
        %v955 = vsel %vm952, %v941, %v949
        %v956 = vsel %vm952, %v943, %v951
        %v957 = vsel %vm952, %v945, %v937
        %v958 = vsel %vm952, %v947, %v939
        %v959 = vsel %vm952, %v949, %v941
        %v960 = vsel %vm952, %v951, %v943
        %v961 = vlaneseq
        %v962 = vshrl.u32 %v961, 7
        %v963 = vsub.s32 7, %v962
        %v964 = vrot.slane %v352, %v963
        %v965 = vlaneseq
        %v966 = vshrl.u32 %v965, 7
        %v967 = vsub.s32 7, %v966
        %v968 = vrot.slane %v353, %v967
        %v969 = vmul.f32 %v953, %v964
        %v970 = vmul.f32 %v957, %v968
        %v971 = vmul.f32 %v954, %v964
        %v972 = vmul.f32 %v958, %v968
        %v973 = vmul.f32 %v955, %v964
        %v974 = vmul.f32 %v959, %v968
        %v975 = vmul.f32 %v956, %v964
        %v976 = vmul.f32 %v960, %v968
        %v977 = vpack.c.bf16 %v971, %v969
        %v978 = vpack.c.bf16 %v972, %v970
        %v979 = vpack.c.bf16 %v975, %v973
        %v980 = vpack.c.bf16 %v976, %v974
        %v985 = vunpack.c.l.b16 %v977
        %v986 = vunpack.c.l.b16 %v978
        %v987 = vunpack.c.h.b16 %v977
        %v988 = vunpack.c.h.b16 %v978
        %v989 = vunpack.c.l.b16 %v979
        %v990 = vunpack.c.l.b16 %v980
        %v991 = vunpack.c.h.b16 %v979
        %v992 = vunpack.c.h.b16 %v980
        %v993 = vpack.c.b16 %v986, %v985
        %v994 = vpack.c.b16 %v988, %v987
        %v995 = vpack.c.b16 %v990, %v989
        %v996 = vpack.c.b16 %v992, %v991
        %1001 = vst [vmem:[#allocation2 + $0xe0] sm:$0xff] %v993
        %1002 = vst [vmem:[#allocation2 + $0xe8] sm:$0xff] %v994
        %1003 = vst [vmem:[#allocation2 + $0xf0] sm:$0xff] %v995
        %1004 = vst [vmem:[#allocation2 + $0xf8] sm:$0xff] %v996
        %1005 = vrot.lane.b32.xlu0 %v484, 111
        %v1006 = vpop.permute.xlu0 %1005
        %1007 = vrot.lane.b32.xlu0 %v486, 111
        %v1008 = vpop.permute.xlu0 %1007
        %1009 = vrot.lane.b32.xlu0 %v488, 111
        %v1010 = vpop.permute.xlu0 %1009
        %1011 = vrot.lane.b32.xlu0 %v490, 111
        %v1012 = vpop.permute.xlu0 %1011
        %1013 = vrot.lane.b32.xlu0 %v485, 111
        %v1014 = vpop.permute.xlu0 %1013
        %1015 = vrot.lane.b32.xlu0 %v487, 111
        %v1016 = vpop.permute.xlu0 %1015
        %1017 = vrot.lane.b32.xlu0 %v489, 111
        %v1018 = vpop.permute.xlu0 %1017
        %1019 = vrot.lane.b32.xlu0 %v491, 111
        %v1020 = vpop.permute.xlu0 %1019
        %vm1021 = vcmp.lt.s32.totalorder %v509, 111
        %v1022 = vsel %vm1021, %v1006, %v1014
        %v1023 = vsel %vm1021, %v1008, %v1016
        %v1024 = vsel %vm1021, %v1010, %v1018
        %v1025 = vsel %vm1021, %v1012, %v1020
        %v1026 = vsel %vm1021, %v1014, %v1006
        %v1027 = vsel %vm1021, %v1016, %v1008
        %v1028 = vsel %vm1021, %v1018, %v1010
        %v1029 = vsel %vm1021, %v1020, %v1012
        %v1030 = vlaneseq
        %v1031 = vshrl.u32 %v1030, 7
        %v1032 = vsub.s32 0, %v1031
        %v1033 = vrot.slane %v354, %v1032
        %v1034 = vlaneseq
        %v1035 = vshrl.u32 %v1034, 7
        %v1036 = vsub.s32 0, %v1035
        %v1037 = vrot.slane %v355, %v1036
        %v1038 = vmul.f32 %v1022, %v1033
        %v1039 = vmul.f32 %v1026, %v1037
        %v1040 = vmul.f32 %v1023, %v1033
        %v1041 = vmul.f32 %v1027, %v1037
        %v1042 = vmul.f32 %v1024, %v1033
        %v1043 = vmul.f32 %v1028, %v1037
        %v1044 = vmul.f32 %v1025, %v1033
        %v1045 = vmul.f32 %v1029, %v1037
        %v1046 = vpack.c.bf16 %v1040, %v1038
        %v1047 = vpack.c.bf16 %v1041, %v1039
        %v1048 = vpack.c.bf16 %v1044, %v1042
        %v1049 = vpack.c.bf16 %v1045, %v1043
        %v1054 = vunpack.c.l.b16 %v1046
        %v1055 = vunpack.c.l.b16 %v1047
        %v1056 = vunpack.c.h.b16 %v1046
        %v1057 = vunpack.c.h.b16 %v1047
        %v1058 = vunpack.c.l.b16 %v1048
        %v1059 = vunpack.c.l.b16 %v1049
        %v1060 = vunpack.c.h.b16 %v1048
        %v1061 = vunpack.c.h.b16 %v1049
        %v1062 = vpack.c.b16 %v1055, %v1054
        %v1063 = vpack.c.b16 %v1057, %v1056
        %v1064 = vpack.c.b16 %v1059, %v1058
        %v1065 = vpack.c.b16 %v1061, %v1060
        %1070 = vst [vmem:[#allocation2 + $0x100] sm:$0xff] %v1062
        %1071 = vst [vmem:[#allocation2 + $0x108] sm:$0xff] %v1063
        %1072 = vst [vmem:[#allocation2 + $0x110] sm:$0xff] %v1064
        %1073 = vst [vmem:[#allocation2 + $0x118] sm:$0xff] %v1065
        %v1074 = vld [vmem:[#allocation2] sm:$0xff]
        %v1075 = vld [vmem:[#allocation2 + $0x8] sm:$0xff]
        %v1076 = vld [vmem:[#allocation2 + $0x10] sm:$0xff]
        %v1077 = vld [vmem:[#allocation2 + $0x18] sm:$0xff]
        %v1078 = vld [vmem:[#allocation2 + $0x20] sm:$0xff]
        %v1079 = vld [vmem:[#allocation2 + $0x28] sm:$0xff]
        %v1080 = vld [vmem:[#allocation2 + $0x30] sm:$0xff]
        %v1081 = vld [vmem:[#allocation2 + $0x38] sm:$0xff]
        %v1082 = vld [vmem:[#allocation2 + $0x40] sm:$0xff]
        %v1083 = vld [vmem:[#allocation2 + $0x48] sm:$0xff]
        %v1084 = vld [vmem:[#allocation2 + $0x50] sm:$0xff]
        %v1085 = vld [vmem:[#allocation2 + $0x58] sm:$0xff]
        %v1086 = vld [vmem:[#allocation2 + $0x60] sm:$0xff]
        %v1087 = vld [vmem:[#allocation2 + $0x68] sm:$0xff]
        %v1088 = vld [vmem:[#allocation2 + $0x70] sm:$0xff]
        %v1089 = vld [vmem:[#allocation2 + $0x78] sm:$0xff]
        %v1090 = vld [vmem:[#allocation2 + $0x80] sm:$0xff]
        %v1091 = vld [vmem:[#allocation2 + $0x88] sm:$0xff]
        %v1092 = vld [vmem:[#allocation2 + $0x90] sm:$0xff]
        %v1093 = vld [vmem:[#allocation2 + $0x98] sm:$0xff]
        %v1094 = vld [vmem:[#allocation2 + $0xa0] sm:$0xff]
        %v1095 = vld [vmem:[#allocation2 + $0xa8] sm:$0xff]
        %v1096 = vld [vmem:[#allocation2 + $0xb0] sm:$0xff]
        %v1097 = vld [vmem:[#allocation2 + $0xb8] sm:$0xff]
        %v1098 = vld [vmem:[#allocation2 + $0xc0] sm:$0xff]
        %v1099 = vld [vmem:[#allocation2 + $0xc8] sm:$0xff]
        %v1100 = vld [vmem:[#allocation2 + $0xd0] sm:$0xff]
        %v1101 = vld [vmem:[#allocation2 + $0xd8] sm:$0xff]
        %v1102 = vld [vmem:[#allocation2 + $0xe0] sm:$0xff]
        %v1103 = vld [vmem:[#allocation2 + $0xe8] sm:$0xff]
        %v1104 = vld [vmem:[#allocation2 + $0xf0] sm:$0xff]
        %v1105 = vld [vmem:[#allocation2 + $0xf8] sm:$0xff]
        %v1106 = vld [vmem:[#allocation2 + $0x100] sm:$0xff]
        %v1107 = vld [vmem:[#allocation2 + $0x108] sm:$0xff]
        %v1108 = vld [vmem:[#allocation2 + $0x110] sm:$0xff]
        %v1109 = vld [vmem:[#allocation2 + $0x118] sm:$0xff]
        %v1112 = vunpack.c.l.b16 %v350
        %v1113 = vunpack.c.h.b16 %v350
        %v1114 = vunpack.c.l.b16 %v351
        %v1115 = vpack.c.b16 %v1112, %v1112
        %v1116 = vpack.c.b16 %v1113, %v1113
        %v1117 = vpack.c.b16 %v1114, %v1114
        %v1156 = vunpack.c.l.b16 %v1074
        %v1157 = vunpack.c.h.b16 %v1074
        %v1158 = vunpack.c.l.b16 %v1075
        %v1159 = vunpack.c.h.b16 %v1075
        %v1160 = vunpack.c.l.b16 %v1076
        %v1161 = vunpack.c.h.b16 %v1076
        %v1162 = vunpack.c.l.b16 %v1077
        %v1163 = vunpack.c.h.b16 %v1077
        %v1164 = vunpack.c.l.b16 %v1078
        %v1165 = vunpack.c.h.b16 %v1078
        %v1166 = vunpack.c.l.b16 %v1079
        %v1167 = vunpack.c.h.b16 %v1079
        %v1168 = vunpack.c.l.b16 %v1080
        %v1169 = vunpack.c.h.b16 %v1080
        %v1170 = vunpack.c.l.b16 %v1081
        %v1171 = vunpack.c.h.b16 %v1081
        %v1172 = vunpack.c.l.b16 %v1082
        %v1173 = vunpack.c.h.b16 %v1082
        %v1174 = vunpack.c.l.b16 %v1083
        %v1175 = vunpack.c.h.b16 %v1083
        %v1176 = vunpack.c.l.b16 %v1084
        %v1177 = vunpack.c.h.b16 %v1084
        %v1178 = vunpack.c.l.b16 %v1085
        %v1179 = vunpack.c.h.b16 %v1085
        %v1180 = vunpack.c.l.b16 %v1086
        %v1181 = vunpack.c.h.b16 %v1086
        %v1182 = vunpack.c.l.b16 %v1087
        %v1183 = vunpack.c.h.b16 %v1087
        %v1184 = vunpack.c.l.b16 %v1088
        %v1185 = vunpack.c.h.b16 %v1088
        %v1186 = vunpack.c.l.b16 %v1089
        %v1187 = vunpack.c.h.b16 %v1089
        %v1188 = vunpack.c.l.b16 %v1090
        %v1189 = vunpack.c.h.b16 %v1090
        %v1190 = vunpack.c.l.b16 %v1091
        %v1191 = vunpack.c.h.b16 %v1091
        %v1192 = vunpack.c.l.b16 %v1092
        %v1193 = vunpack.c.h.b16 %v1092
        %v1194 = vunpack.c.l.b16 %v1093
        %v1195 = vunpack.c.h.b16 %v1093
        %v1196 = vunpack.c.l.b16 %v1094
        %v1197 = vunpack.c.h.b16 %v1094
        %v1198 = vunpack.c.l.b16 %v1095
        %v1199 = vunpack.c.h.b16 %v1095
        %v1200 = vunpack.c.l.b16 %v1096
        %v1201 = vunpack.c.h.b16 %v1096
        %v1202 = vunpack.c.l.b16 %v1097
        %v1203 = vunpack.c.h.b16 %v1097
        %v1204 = vunpack.c.l.b16 %v1098
        %v1205 = vunpack.c.h.b16 %v1098
        %v1206 = vunpack.c.l.b16 %v1099
        %v1207 = vunpack.c.h.b16 %v1099
        %v1208 = vunpack.c.l.b16 %v1100
        %v1209 = vunpack.c.h.b16 %v1100
        %v1210 = vunpack.c.l.b16 %v1101
        %v1211 = vunpack.c.h.b16 %v1101
        %v1212 = vunpack.c.l.b16 %v1102
        %v1213 = vunpack.c.h.b16 %v1102
        %v1214 = vunpack.c.l.b16 %v1103
        %v1215 = vunpack.c.h.b16 %v1103
        %v1216 = vunpack.c.l.b16 %v1104
        %v1217 = vunpack.c.h.b16 %v1104
        %v1218 = vunpack.c.l.b16 %v1105
        %v1219 = vunpack.c.h.b16 %v1105
        %v1220 = vunpack.c.l.b16 %v1106
        %v1221 = vunpack.c.h.b16 %v1106
        %v1222 = vunpack.c.l.b16 %v1107
        %v1223 = vunpack.c.h.b16 %v1107
        %v1224 = vunpack.c.l.b16 %v1108
        %v1225 = vunpack.c.h.b16 %v1108
        %v1226 = vunpack.c.l.b16 %v1109
        %v1227 = vunpack.c.h.b16 %v1109
        %v1228 = vpack.c.b16 %v1158, %v1156
        %v1229 = vpack.c.b16 %v1159, %v1157
        %v1230 = vpack.c.b16 %v1162, %v1160
        %v1231 = vpack.c.b16 %v1163, %v1161
        %v1232 = vpack.c.b16 %v1166, %v1164
        %v1233 = vpack.c.b16 %v1167, %v1165
        %v1234 = vpack.c.b16 %v1170, %v1168
        %v1235 = vpack.c.b16 %v1171, %v1169
        %v1236 = vpack.c.b16 %v1174, %v1172
        %v1237 = vpack.c.b16 %v1175, %v1173
        %v1238 = vpack.c.b16 %v1178, %v1176
        %v1239 = vpack.c.b16 %v1179, %v1177
        %v1240 = vpack.c.b16 %v1182, %v1180
        %v1241 = vpack.c.b16 %v1183, %v1181
        %v1242 = vpack.c.b16 %v1186, %v1184
        %v1243 = vpack.c.b16 %v1187, %v1185
        %v1244 = vpack.c.b16 %v1190, %v1188
        %v1245 = vpack.c.b16 %v1191, %v1189
        %v1246 = vpack.c.b16 %v1194, %v1192
        %v1247 = vpack.c.b16 %v1195, %v1193
        %v1248 = vpack.c.b16 %v1198, %v1196
        %v1249 = vpack.c.b16 %v1199, %v1197
        %v1250 = vpack.c.b16 %v1202, %v1200
        %v1251 = vpack.c.b16 %v1203, %v1201
        %v1252 = vpack.c.b16 %v1206, %v1204
        %v1253 = vpack.c.b16 %v1207, %v1205
        %v1254 = vpack.c.b16 %v1210, %v1208
        %v1255 = vpack.c.b16 %v1211, %v1209
        %v1256 = vpack.c.b16 %v1214, %v1212
        %v1257 = vpack.c.b16 %v1215, %v1213
        %v1258 = vpack.c.b16 %v1218, %v1216
        %v1259 = vpack.c.b16 %v1219, %v1217
        %v1260 = vpack.c.b16 %v1222, %v1220
        %v1261 = vpack.c.b16 %v1223, %v1221
        %v1262 = vpack.c.b16 %v1226, %v1224
        %v1263 = vpack.c.b16 %v1227, %v1225
        %vm1300 = vcmask 261120
        %v1302 = vsel %vm1300, %v1117, 0
        %1304 = vmatprep.subr.bf16.mxu0 %v1243
        %1305 = vmatpush1.bf16.msra.mxu0 %v1242
        %1306 = vmatprep.subr.bf16.mxu0 %v1241
        %1307 = vmatpush1.bf16.msra.mxu0 %v1240
        %1308 = vmatprep.subr.bf16.mxu0 %v1239
        %1309 = vmatpush1.bf16.msra.mxu0 %v1238
        %1310 = vmatprep.subr.bf16.mxu0 %v1237
        %1311 = vmatpush1.bf16.msra.mxu0 %v1236
        %1312 = vmatprep.subr.bf16.mxu0 %v1235
        %1313 = vmatpush1.bf16.msra.mxu0 %v1234
        %1314 = vmatprep.subr.bf16.mxu0 %v1233
        %1315 = vmatpush1.bf16.msra.mxu0 %v1232
        %1316 = vmatprep.subr.bf16.mxu0 %v1231
        %1317 = vmatpush1.bf16.msra.mxu0 %v1230
        %1318 = vmatprep.subr.bf16.mxu0 %v1229
        %1319 = vmatpush1.bf16.msra.mxu0 %v1228
        %1320 = vmatprep.subr.bf16.mxu0 %v1259
        %1321 = vmatpush2.bf16.msra.mxu0 %v1258
        %1322 = vmatprep.subr.bf16.mxu0 %v1257
        %1323 = vmatpush2.bf16.msra.mxu0 %v1256
        %1324 = vmatprep.subr.bf16.mxu0 %v1255
        %1325 = vmatpush2.bf16.msra.mxu0 %v1254
        %1326 = vmatprep.subr.bf16.mxu0 %v1253
        %1327 = vmatpush2.bf16.msra.mxu0 %v1252
        %1328 = vmatprep.subr.bf16.mxu0 %v1251
        %1329 = vmatpush2.bf16.msra.mxu0 %v1250
        %1330 = vmatprep.subr.bf16.mxu0 %v1249
        %1331 = vmatpush2.bf16.msra.mxu0 %v1248
        %1332 = vmatprep.subr.bf16.mxu0 %v1247
        %1333 = vmatpush2.bf16.msra.mxu0 %v1246
        %1334 = vmatprep.subr.bf16.mxu0 %v1245
        %1335 = vmatpush2.bf16.msra.mxu0 %v1244
        %1336 = vmatprep.mubr.bf16.mxu0 %v1116
        %1337 = vmatmul.mubr.bf16.gmra.mxu0 %v1115
        %v1338 = vpop.f32.mrf.mxu0
        %v1339 = vadd.f32 0.0, %v1338
        %v1340 = vpop.f32.mrf.mxu0
        %v1341 = vadd.f32 0.0, %v1340
        %v1342 = vpop.f32.mrf.mxu0
        %v1343 = vpop.f32.mrf.mxu0
        %1344 = vdwg.mxu0
        %1345 = vmatprep.subr.bf16.mxu0 0
        %1346 = vmatpush1.bf16.msra.mxu0 0
        %1347 = vmatprep.subr.bf16.mxu0 0
        %1348 = vmatpush1.bf16.msra.mxu0 0
        %1349 = vmatprep.subr.bf16.mxu0 0
        %1350 = vmatpush1.bf16.msra.mxu0 0
        %1351 = vmatprep.subr.bf16.mxu0 0
        %1352 = vmatpush1.bf16.msra.mxu0 0
        %1353 = vmatprep.subr.bf16.mxu0 0
        %1354 = vmatpush1.bf16.msra.mxu0 0
        %1355 = vmatprep.subr.bf16.mxu0 0
        %1356 = vmatpush1.bf16.msra.mxu0 0
        %1357 = vmatprep.subr.bf16.mxu0 %v1263
        %1358 = vmatpush1.bf16.msra.mxu0 %v1262
        %1359 = vmatprep.subr.bf16.mxu0 %v1261
        %1360 = vmatpush1.bf16.msra.mxu0 %v1260
        %1361 = vmatprep.subr.bf16.mxu0 0
        %1362 = vmatpush2.bf16.msra.mxu0 0
        %1363 = vmatprep.subr.bf16.mxu0 0
        %1364 = vmatpush2.bf16.msra.mxu0 0
        %1365 = vmatprep.subr.bf16.mxu0 0
        %1366 = vmatpush2.bf16.msra.mxu0 0
        %1367 = vmatprep.subr.bf16.mxu0 0
        %1368 = vmatpush2.bf16.msra.mxu0 0
        %1369 = vmatprep.subr.bf16.mxu0 0
        %1370 = vmatpush2.bf16.msra.mxu0 0
        %1371 = vmatprep.subr.bf16.mxu0 0
        %1372 = vmatpush2.bf16.msra.mxu0 0
        %1373 = vmatprep.subr.bf16.mxu0 0
        %1374 = vmatpush2.bf16.msra.mxu0 0
        %1375 = vmatprep.subr.bf16.mxu0 0
        %1376 = vmatpush2.bf16.msra.mxu0 0
        %1377 = vmatprep.mubr.bf16.mxu0 0
        %1378 = vmatmul.mubr.bf16.gmra.mxu0 %v1302
        %v1379 = vpop.f32.mrf.mxu0
        %v1380 = vadd.f32 %v1339, %v1379
        %v1381 = vpop.f32.mrf.mxu0
        %v1382 = vadd.f32 %v1341, %v1381
        %v1383 = vpop.f32.mrf.mxu0
        %v1384 = vpop.f32.mrf.mxu0
        %1385 = vdwg.mxu0
        %1386 = vst [vmem:[%s326] sm:$0xff] %v1380
        %1387 = vst [vmem:[%s326 + $0x8] sm:$0xff] %v1382
        %s1388 = sand.u32 %s209, 1
        %s1389 = scalar_lea.sflag [#allocation5], %s1388
        %s1390 = sand.u32 %s209, 1
        %s1391 = smul.addr %s1390, 16
        %s1392 = scalar_lea.vmem [#allocation6], %s1391
        // Predicated region
        $region57: #{tpu_custom_call.1} parent=51 // pred_check
          %p1393 = pneg %p219
        $region58: #{tpu_custom_call.1} parent=51 // pred_check_branch
          %1395 = sbr.rel (%p1393) target = $region60
        $region59: #{tpu_custom_call.1} parent=51 // pred_region
          %s1397 = ssub.s32 256, 256
          %1398 = vsyncadd %s1389, %s1397
          %s1399 = smul.addr %s23, 2
          %s1400 = smul.addr %s1399, 128
          %s1401 = scalar_lea.hbm %s8, %s1400
          %s1403 = sshll.u32 %s1392, 4
          %s1404 = int_to_ptr.vmem [resolvable:$true] %s1403
          %1406 = dma.vmem_to_hbm [thread:$0]  %s1404, 256, %s1401, %s1389
        $region60: #{tpu_custom_call.1} parent=51 // pred_fallthru
          _
      $region52: #{tpu_custom_call.1} parent=5 // pred_fallthru
        _
      %p1407 = scmp.le.s32.totalorder 2, %s18
      // Predicated region
      $region61: #{tpu_custom_call.1} parent=5 // pred_check
        %p1408 = pneg %p1407
      $region62: #{tpu_custom_call.1} parent=5 // pred_check_branch
        %1410 = sbr.rel (%p1408) target = $region64
      $region63: #{tpu_custom_call.1} parent=5 // pred_region
        %s1411 = ssub.s32 %s18, 2
        // Predicated region
        $region65: #{tpu_custom_call.1} parent=63 // pred_check
          %p1412 = pneg %p225
        $region66: #{tpu_custom_call.1} parent=63 // pred_check_branch
          %1414 = sbr.rel (%p1412) target = $region68
        $region67: #{tpu_custom_call.1} parent=63 // pred_region
          %s1415 = sand.u32 %s210, 1
          %s1416 = scalar_lea.sflag [#allocation5], %s1415
          %s1417 = sand.u32 %s210, 1
          %s1418 = smul.addr %s1417, 16
          %s1419 = scalar_lea.vmem [#allocation6], %s1418
          %1420 = dma.done %s1416, 256
        $region68: #{tpu_custom_call.1} parent=63 // pred_fallthru
          _
      $region64: #{tpu_custom_call.1} parent=5 // pred_fallthru
        _
    $region6: #{tpu_custom_call.1} parent=1 // loop_footer
      %s22 = sadd.s32 1, %s18
    $region7: #{tpu_custom_call.1} parent=1 // loop_footer_branch
      %17 = sbr.rel target = $region3
    $region8: #{tpu_custom_call.1} parent=1 // loop_exit
      _
    %1421 = vsyncpa [#allocation4], 1
    %s1422 = scalar_lea.sflag [#allocation4], 1
    %1423 = vsyncpa %s1422, 1
    %1424 = vsyncpa [#allocation5], 1
    %s1425 = scalar_lea.sflag [#allocation5], 1
    %1426 = vsyncpa %s1425, 1

</llo_original>
